<compile_context>
chip_gen: v7x
topology: tpu7x:2x2x1
jax: 0.10.0
libtpu: 0.0.40
codegen_flags: <defaults>
</compile_context>

<pallas_src>
import functools
import math

import jax
import jax.numpy as jnp
from jax.experimental import pallas as pl
from jax.experimental.pallas import tpu as pltpu


_TARGET_BLOCK_BYTES = 2 * 1024 * 1024      # ~2 MiB per input tile; in+out double-buffered ~8 MiB


def _round_up(v, m):
    return -(-v // m) * m


def _round_down(v, m):
    return (v // m) * m


def _cosine_cutoff_kernel(x_ref, o_ref, *, start, cutoff, scale):
    # Compute in f32 regardless of input dtype (bf16 pi / bf16 cos precision).
    x = x_ref[...].astype(jnp.float32)
    # Subtract-first: same op count as a fused scale/offset but no cancellation
    # when |start| is large relative to (cutoff - start).  Argument is in [0, pi].
    u = (jnp.clip(x, start, cutoff) - start) * scale
    o_ref[...] = (0.5 * (1.0 + jnp.cos(u))).astype(o_ref.dtype)


def _run_2d(x2d, *, start, cutoff, scale, target_bytes):
    """Run the cutoff kernel over a 2-D array, tiling rows (and huge columns)."""
    R, C = x2d.shape
    itemsize = x2d.dtype.itemsize

    # Column block: full width unless C is a huge multiple of 128.
    if C % 128 == 0 and C * 8 * itemsize > target_bytes:
        tc = max(128, _round_down(target_bytes // (8 * itemsize), 128))
    else:
        tc = C                                   # full-dim last block (always legal)

    # Row block from the byte budget (multiple of 8, or full-dim when R < 8).
    if R <= 8:
        tm = R
    else:
        budget_rows = max(8, _round_down(target_bytes // max(tc * itemsize, 1), 8))
        tm = min(budget_rows, R)
        if tm >= R:
            # Guarantee >=2 row blocks so both v7x TensorCores get work.
            tm = max(8, _round_up(-(-R // 2), 8))

    grid = (pl.cdiv(R, tm), pl.cdiv(C, tc))

    n = R * C
    cost = pl.CostEstimate(
        flops=6 * n,                     # clamp (2) + sub + mul + add + mul
        transcendentals=n,               # one cos per element
        bytes_accessed=2 * n * itemsize, # read input + write output
    )

    kernel = functools.partial(
        _cosine_cutoff_kernel,
        start=float(start), cutoff=float(cutoff), scale=float(scale),
    )

    return pl.pallas_call(
        kernel,
        out_shape=jax.ShapeDtypeStruct((R, C), x2d.dtype),
        grid_spec=pltpu.PrefetchScalarGridSpec(
            num_scalar_prefetch=0,
            grid=grid,
            in_specs=[pl.BlockSpec((tm, tc), lambda i, j: (i, j))],
            out_specs=pl.BlockSpec((tm, tc), lambda i, j: (i, j)),
        ),
        compiler_params=pltpu.CompilerParams(
            dimension_semantics=("parallel", "parallel"),
            vmem_limit_bytes=32 * 1024 * 1024,
        ),
        cost_estimate=cost,
    )(x2d)


def cosine_cutoff(x, cutoff: float, start: float = 0.0, *,
                  target_block_bytes: int = _TARGET_BLOCK_BYTES):
    """Apply the cosine cutoff elementwise via a Pallas TPU kernel.

    Preserves the input's shape and dtype.
    """
    assert start < cutoff
    orig_shape = x.shape
    orig_dtype = x.dtype
    total = math.prod(orig_shape) if orig_shape else 1
    if total == 0:
        return jnp.zeros(orig_shape, orig_dtype)

    scale = math.pi / (float(cutoff) - float(start))
    run = functools.partial(_run_2d, start=float(start), cutoff=float(cutoff),
                            scale=scale, target_bytes=target_block_bytes)

    if x.ndim >= 2:
        # Collapse leading dims (free for row-major) and keep the trailing dim,
        # avoiding any physical relayout of XLA's padded HBM layout.
        D = orig_shape[-1]
        out = run(x.reshape(total // D, D))
        return out.reshape(orig_shape)

    # 0-D / 1-D inputs: view as a lane-dense [rows, C] slab.
    flat = x.reshape(total)
    for C in (1024, 512, 256, 128):
        if total % C == 0:
            out = run(flat.reshape(total // C, C))
            return out.reshape(orig_shape)

    if total < 1024:
        out = run(flat.reshape(1, total))            # single full-dim block
        return out.reshape(orig_shape)

    # Ragged 1-D: lane-dense body call + tiny (<1024-element) tail call.
    body = (total // 1024) * 1024
    out_body = run(flat[:body].reshape(body // 1024, 1024)).reshape(body)
    out_tail = run(flat[body:].reshape(1, total - body)).reshape(total - body)
    # TODO(synk): the concatenate still costs one output-sized HBM copy; fusing this
    #             op into its producer/consumer as an epilogue would remove it.
    return jnp.concatenate([out_body, out_tail]).reshape(orig_shape)


def cosine_cutoff_ref(x, cutoff, start=0.0):
    """Pure-JAX reference matching the PyTorch forward (computed in f32)."""
    x32 = x.astype(jnp.float32)
    u = (jnp.clip(x32, start, cutoff) - start) / (cutoff - start)
    return 0.5 * (1.0 + jnp.cos(jnp.pi * u))


if __name__ == "__main__":
    key = jax.random.PRNGKey(0)
    cutoff = 5.0
    start = 1.0
    k1, k2, k3, k4, k5 = jax.random.split(key, 5)

    # 1) Narrow trailing dim (keep-shape path, masked lane stores, no relayout).
    x1 = jax.random.uniform(k1, (256, 8), dtype=jnp.float32, minval=0.0, maxval=7.0)
    y1 = cosine_cutoff(x1, cutoff=cutoff, start=start)
    jax.block_until_ready(y1)
    assert y1.shape == x1.shape and y1.dtype == x1.dtype
    assert jnp.allclose(y1, cosine_cutoff_ref(x1, cutoff, start), atol=1e-5, rtol=1e-5)

    # 2) Distance-column case (N, 1) with a non-multiple-of-8 row count.
    x2 = jax.random.uniform(k2, (1000, 1), dtype=jnp.float32, minval=0.0, maxval=7.0)
    y2 = cosine_cutoff(x2, cutoff=cutoff, start=start)
    jax.block_until_ready(y2)
    assert y2.shape == x2.shape and y2.dtype == x2.dtype
    assert jnp.allclose(y2, cosine_cutoff_ref(x2, cutoff, start), atol=1e-5, rtol=1e-5)

    # 3) Tiny ragged shape (single full-dim block).
    x3 = jax.random.uniform(k3, (7, 5), dtype=jnp.float32, minval=0.0, maxval=7.0)
    y3 = cosine_cutoff(x3, cutoff=cutoff, start=start)
    jax.block_until_ready(y3)
    assert y3.shape == x3.shape and y3.dtype == x3.dtype
    assert jnp.allclose(y3, cosine_cutoff_ref(x3, cutoff, start), atol=1e-5, rtol=1e-5)

    # 4) bf16 multi-dim input with a lane-aligned trailing dim (collapse path).
    x4 = jax.random.uniform(k4, (2, 4, 128), dtype=jnp.float32, minval=0.0, maxval=7.0
                            ).astype(jnp.bfloat16)
    y4 = cosine_cutoff(x4, cutoff=cutoff, start=start)
    jax.block_until_ready(y4)
    assert y4.shape == x4.shape and y4.dtype == x4.dtype
    assert jnp.allclose(y4.astype(jnp.float32),
                        cosine_cutoff_ref(x4, cutoff, start), atol=1e-2, rtol=1e-2)

    # 5) 1-D ragged distance vector (body + tail path, no whole-array pad/slice).
    x5 = jax.random.uniform(k5, (1157,), dtype=jnp.float32, minval=0.0, maxval=7.0)
    y5 = cosine_cutoff(x5, cutoff=cutoff, start=start)
    jax.block_until_ready(y5)
    assert y5.shape == x5.shape and y5.dtype == x5.dtype
    assert jnp.allclose(y5, cosine_cutoff_ref(x5, cutoff, start), atol=1e-5, rtol=1e-5)

    print("KERNEL_OK")
</pallas_src>

<mosaic_0001>
module attributes {stable_mosaic.version = 11 : i64} {
  func.func @_cosine_cutoff_kernel(%arg0: i32, %arg1: i32, %arg2: memref<128x8xf32, #tpu.memory_space<vmem>>, %arg3: memref<128x8xf32, #tpu.memory_space<vmem>>) attributes {dimension_semantics = [#tpu.dimension_semantics<parallel>, #tpu.dimension_semantics<parallel>], iteration_bounds = array<i64: 2, 1>, scalar_prefetch = 0 : i64, scratch_operands = 0 : i64, tpu.core_type = #tpu.core_type<tc>, window_params = [{transform_indices = @transform_0, window_bounds = array<i64: 128, 8>}, {transform_indices = @transform_1, window_bounds = array<i64: 128, 8>}]} {
    %c0 = arith.constant 0 : index
    %c0_0 = arith.constant 0 : index
    %0 = vector.load %arg2[%c0, %c0_0] : memref<128x8xf32, #tpu.memory_space<vmem>>, vector<128x8xf32>
    %cst = arith.constant 1.000000e+00 : f32
    %cst_1 = arith.constant 5.000000e+00 : f32
    %1 = vector.broadcast %cst : f32 to vector<128x8xf32>
    %2 = arith.maximumf %1, %0 : vector<128x8xf32>
    %3 = vector.broadcast %cst_1 : f32 to vector<128x8xf32>
    %4 = arith.minimumf %3, %2 : vector<128x8xf32>
    %cst_2 = arith.constant 1.000000e+00 : f32
    %5 = vector.broadcast %cst_2 : f32 to vector<128x8xf32>
    %6 = arith.subf %4, %5 : vector<128x8xf32>
    %cst_3 = arith.constant 0.785398185 : f32
    %7 = vector.broadcast %cst_3 : f32 to vector<128x8xf32>
    %8 = arith.mulf %6, %7 : vector<128x8xf32>
    %9 = math.cos %8 : vector<128x8xf32>
    %cst_4 = arith.constant 1.000000e+00 : f32
    %10 = vector.broadcast %cst_4 : f32 to vector<128x8xf32>
    %11 = arith.addf %10, %9 : vector<128x8xf32>
    %cst_5 = arith.constant 5.000000e-01 : f32
    %12 = vector.broadcast %cst_5 : f32 to vector<128x8xf32>
    %13 = arith.mulf %12, %11 : vector<128x8xf32>
    %c0_6 = arith.constant 0 : index
    %c0_7 = arith.constant 0 : index
    %14 = vector.load %arg3[%c0_6, %c0_7] : memref<128x8xf32, #tpu.memory_space<vmem>>, vector<128x8xf32>
    tpu.vector_store %arg3[%c0_6, %c0_7], %13 {strides = array<i32>} : memref<128x8xf32, #tpu.memory_space<vmem>>, vector<128x8xf32>,
    return
  }
  func.func @transform_0(%arg0: i32, %arg1: i32) -> (i32, i32) {
    %c0_i32 = arith.constant 0 : i32
    return %arg0, %arg1 : i32, i32
  }
  func.func @transform_1(%arg0: i32, %arg1: i32) -> (i32, i32) {
    %c0_i32 = arith.constant 0 : i32
    return %arg0, %arg1 : i32, i32
  }
}

</mosaic_0001>

<llo_original>
// kernel: tpu_custom_call.1
$region0: #{tpu_custom_call.1}
  #allocation0 [shape = 'u32[]', space=smem, size = 0x4, offset = 0x4, fixed_abs, tag = 'smem constant byte address 0x4 - core index']
  #allocation1 [shape = 'u32[144,128]{1,0:T(1,128)}', space=vmem, size = 0x12000, scoped, tag = 'internal scratch']
  %s0 = inlined_call_operand.vmem [shape: f32[256,8], index: 0, kind: input, shape index: {}]
  %s1 = inlined_call_operand.vmem [shape: f32[256,8], index: 1, kind: output, shape index: {}]
  %s2 = sld [smem:[#allocation0]]
  $region37: #{tpu_custom_call.1} parent=0
    _
  %s4 = ssub.s32 1, %s2
  %s5 = scalar_select 0, %s4, %s2
  loop: start=0, step=1, limit=4
  $region2: #{tpu_custom_call.1} parent=0 // loop_pre_header
    _
  $region3: #{tpu_custom_call.1} parent=0 // loop_header
    %s7 = sphi 0, %s11
    %p8 = scmp.ge.s32.totalorder %s7, 4
    %s14 = sphi 0, %s26
    %s15 = sphi 0, %s22
    %s16 = sphi 0, %s14
    %s17 = sphi 0, %s15
    %s18 = sphi 0, %s16
    %s19 = sphi 0, %s17
    %s31 = sphi 0, %s33
    %s34 = sphi 0, %s31
    %s35 = sphi 0, %s34
    %s51 = sphi 0, %s35
    %s59 = sphi 0, %s61
    %s62 = sphi 0, %s59
    %s63 = sphi 0, %s62
    %s79 = sphi 0, %s63
  $region4: #{tpu_custom_call.1} parent=0 // loop_header_branch
    %10 = sbr.rel (%p8) target = $region8
  $region5: #{tpu_custom_call.1} parent=0 // loop_body
    %s12 = ssub.s32 %s7, 1
    %s13 = ssub.s32 %s7, 2
    %s20 = sadd.s32 1, %s15
    %p21 = scmp.ge.s32.totalorder %s20, 1
    %s22 = scalar_select %p21, 0, %s20
    %s23 = sadd.s32 1, %s14
    %s24 = scalar_select %p21, %s23, %s14
    %p25 = scmp.ge.s32.totalorder %s24, 2
    %s26 = scalar_select %p25, 0, %s24
    %s27 = ssub.s32 %s14, %s26
    %s28 = ssub.s32 %s15, %s22
    %s29 = sor.u32 %s27, %s28
    %p30 = scmp.eq.s32.totalorder %s29, 0
    %s32 = sadd.s32 %s31, 1
    %s33 = scalar_select %p30, %s31, %s32
    %p36 = pneg %p30
    %p37 = scmp.eq.s32.totalorder %s7, 1
    %p38 = por %p36, %p37
    %p39 = scmp.ne.s32.totalorder %s31, %s34
    %p40 = scmp.eq.s32.totalorder %s7, 0
    %p41 = por %p39, %p40
    %p42 = scmp.ne.s32.totalorder %s31, %s34
    %p43 = scmp.eq.s32.totalorder %s12, 1
    %p44 = por %p42, %p43
    %p45 = scmp.ne.s32.totalorder %s34, %s35
    %p46 = scmp.eq.s32.totalorder %s12, 0
    %p47 = por %p45, %p46
    %p48 = scmp.ne.s32.totalorder %s34, %s35
    %p49 = scmp.eq.s32.totalorder %s13, 1
    %p50 = por %p48, %p49
    %p52 = scmp.ne.s32.totalorder %s35, %s51
    %p53 = scmp.eq.s32.totalorder %s13, 0
    %p54 = por %p52, %p53
    %s55 = ssub.s32 %s14, %s26
    %s56 = ssub.s32 %s15, %s22
    %s57 = sor.u32 %s55, %s56
    %p58 = scmp.eq.s32.totalorder %s57, 0
    %s60 = sadd.s32 %s59, 1
    %s61 = scalar_select %p58, %s59, %s60
    %p64 = pneg %p58
    %p65 = scmp.eq.s32.totalorder %s7, 1
    %p66 = por %p64, %p65
    %p67 = scmp.ne.s32.totalorder %s59, %s62
    %p68 = scmp.eq.s32.totalorder %s7, 0
    %p69 = por %p67, %p68
    %p70 = scmp.ne.s32.totalorder %s59, %s62
    %p71 = scmp.eq.s32.totalorder %s12, 1
    %p72 = por %p70, %p71
    %p73 = scmp.ne.s32.totalorder %s62, %s63
    %p74 = scmp.eq.s32.totalorder %s12, 0
    %p75 = por %p73, %p74
    %p76 = scmp.ne.s32.totalorder %s62, %s63
    %p77 = scmp.eq.s32.totalorder %s13, 1
    %p78 = por %p76, %p77
    %p80 = scmp.ne.s32.totalorder %s63, %s79
    %p81 = scmp.eq.s32.totalorder %s13, 0
    %p82 = por %p80, %p81
    %p83 = scmp.le.s32.totalorder 1, %s7
    %p84 = scmp.lt.s32.totalorder %s7, 3
    %p85 = pnand %p83, %p84
    %p86 = pneg %p85
    // Predicated region
    $region9: #{tpu_custom_call.1} parent=5 // pred_check
      _
    $region10: #{tpu_custom_call.1} parent=5 // pred_check_branch
      %88 = sbr.rel (%p85) target = $region12
    $region11: #{tpu_custom_call.1} parent=5 // pred_region
      %s89 = ssub.s32 %s7, 1
    $region12: #{tpu_custom_call.1} parent=5 // pred_fallthru
      _
    %p90 = scmp.lt.s32.totalorder %s7, 2
    // Predicated region
    $region13: #{tpu_custom_call.1} parent=5 // pred_check
      %p91 = pneg %p90
    $region14: #{tpu_custom_call.1} parent=5 // pred_check_branch
      %93 = sbr.rel (%p91) target = $region16
    $region15: #{tpu_custom_call.1} parent=5 // pred_region
      // Predicated region
      $region17: #{tpu_custom_call.1} parent=15 // pred_check
        %p94 = pneg %p41
      $region18: #{tpu_custom_call.1} parent=15 // pred_check_branch
        %96 = sbr.rel (%p94) target = $region20
      $region19: #{tpu_custom_call.1} parent=15 // pred_region
        %s97 = smul.u32 16, %s14
        %p98 = scmp.lt.s32.totalorder %s97, 31
        %s99 = scalar_select %p98, %s97, 31
        %p100 = scmp.lt.s32.totalorder %s15, 0
        %s101 = scalar_select %p100, %s15, 0
        %s102 = sadd.s32 %s101, %s99
        %s103 = smul.addr %s102, 8
        %s104 = scalar_lea.vmem %s0, %s103
        %s105 = smul.u32 16, %s14
      $region20: #{tpu_custom_call.1} parent=15 // pred_fallthru
        _
    $region16: #{tpu_custom_call.1} parent=5 // pred_fallthru
      _
    %p106 = scmp.le.s32.totalorder 1, %s7
    %p107 = scmp.lt.s32.totalorder %s7, 3
    %p108 = pnand %p106, %p107
    %p109 = pneg %p108
    // Predicated region
    $region21: #{tpu_custom_call.1} parent=5 // pred_check
      _
    $region22: #{tpu_custom_call.1} parent=5 // pred_check_branch
      %111 = sbr.rel (%p108) target = $region24
    $region23: #{tpu_custom_call.1} parent=5 // pred_region
      %s112 = ssub.s32 %s7, 1
      %s113 = smul.u32 16, %s16
      %p114 = scmp.lt.s32.totalorder %s113, 31
      %s115 = scalar_select %p114, %s113, 31
      %p116 = scmp.lt.s32.totalorder %s17, 0
      %s117 = scalar_select %p116, %s17, 0
      %s118 = sadd.s32 %s117, %s115
      %s119 = smul.addr %s118, 8
      %s120 = scalar_lea.vmem %s0, %s119
      %p121 = pneg %p47
      %p122 = pneg %p44
      %p123 = pneg %p75
      %p124 = pneg %p72
      %s125 = smul.u32 16, %s16
      %p126 = scmp.lt.s32.totalorder %s125, 31
      %s127 = scalar_select %p126, %s125, 31
      %p128 = scmp.lt.s32.totalorder %s17, 0
      %s129 = scalar_select %p128, %s17, 0
      %s130 = sadd.s32 %s129, %s127
      %s131 = smul.addr %s130, 8
      %s132 = scalar_lea.vmem %s1, %s131
      %s133 = smul.u32 16, %s16
      %p134 = scmp.lt.s32.totalorder %s133, 31
      %s135 = scalar_select %p134, %s133, 31
      %p136 = scmp.lt.s32.totalorder %s17, 0
      %s137 = scalar_select %p136, %s17, 0
      %s138 = sadd.s32 %s137, %s135
      %s139 = smul.addr %s138, 8
      %s140 = scalar_lea.vmem %s0, %s139
      %s141 = smul.u32 16, %s16
      %s142 = smul.u32 16, %s16
      %p143 = scmp.lt.s32.totalorder %s142, 31
      %s144 = scalar_select %p143, %s142, 31
      %p145 = scmp.lt.s32.totalorder %s17, 0
      %s146 = scalar_select %p145, %s17, 0
      %s147 = sadd.s32 %s146, %s144
      %s148 = smul.addr %s147, 8
      %s149 = scalar_lea.vmem %s1, %s148
      %s150 = smul.u32 16, %s16
      %v151 = vld [vmem:[%s140] sm:$0xff]
      %v152 = vld [vmem:[%s140 + $0x8] sm:$0xff]
      %v153 = vld [vmem:[%s140 + $0x10] sm:$0xff]
      %v154 = vld [vmem:[%s140 + $0x18] sm:$0xff]
      %v155 = vld [vmem:[%s140 + $0x20] sm:$0xff]
      %v156 = vld [vmem:[%s140 + $0x28] sm:$0xff]
      %v157 = vld [vmem:[%s140 + $0x30] sm:$0xff]
      %v158 = vld [vmem:[%s140 + $0x38] sm:$0xff]
      %v159 = vld [vmem:[%s140 + $0x40] sm:$0xff]
      %v160 = vld [vmem:[%s140 + $0x48] sm:$0xff]
      %v161 = vld [vmem:[%s140 + $0x50] sm:$0xff]
      %v162 = vld [vmem:[%s140 + $0x58] sm:$0xff]
      %v163 = vld [vmem:[%s140 + $0x60] sm:$0xff]
      %v164 = vld [vmem:[%s140 + $0x68] sm:$0xff]
      %v165 = vld [vmem:[%s140 + $0x70] sm:$0xff]
      %v166 = vld [vmem:[%s140 + $0x78] sm:$0xff]
      %v167 = vmax.f32 %v151, 1.0
      %v168 = vmax.f32 %v152, 1.0
      %v169 = vmax.f32 %v153, 1.0
      %v170 = vmax.f32 %v154, 1.0
      %v171 = vmax.f32 %v155, 1.0
      %v172 = vmax.f32 %v156, 1.0
      %v173 = vmax.f32 %v157, 1.0
      %v174 = vmax.f32 %v158, 1.0
      %v175 = vmax.f32 %v159, 1.0
      %v176 = vmax.f32 %v160, 1.0
      %v177 = vmax.f32 %v161, 1.0
      %v178 = vmax.f32 %v162, 1.0
      %v179 = vmax.f32 %v163, 1.0
      %v180 = vmax.f32 %v164, 1.0
      %v181 = vmax.f32 %v165, 1.0
      %v182 = vmax.f32 %v166, 1.0
      %v183 = vmin.f32 %v167, 5.0
      %v184 = vmin.f32 %v168, 5.0
      %v185 = vmin.f32 %v169, 5.0
      %v186 = vmin.f32 %v170, 5.0
      %v187 = vmin.f32 %v171, 5.0
      %v188 = vmin.f32 %v172, 5.0
      %v189 = vmin.f32 %v173, 5.0
      %v190 = vmin.f32 %v174, 5.0
      %v191 = vmin.f32 %v175, 5.0
      %v192 = vmin.f32 %v176, 5.0
      %v193 = vmin.f32 %v177, 5.0
      %v194 = vmin.f32 %v178, 5.0
      %v195 = vmin.f32 %v179, 5.0
      %v196 = vmin.f32 %v180, 5.0
      %v197 = vmin.f32 %v181, 5.0
      %v198 = vmin.f32 %v182, 5.0
      %v199 = vsub.f32 %v183, 1.0
      %v200 = vsub.f32 %v184, 1.0
      %v201 = vsub.f32 %v185, 1.0
      %v202 = vsub.f32 %v186, 1.0
      %v203 = vsub.f32 %v187, 1.0
      %v204 = vsub.f32 %v188, 1.0
      %v205 = vsub.f32 %v189, 1.0
      %v206 = vsub.f32 %v190, 1.0
      %v207 = vsub.f32 %v191, 1.0
      %v208 = vsub.f32 %v192, 1.0
      %v209 = vsub.f32 %v193, 1.0
      %v210 = vsub.f32 %v194, 1.0
      %v211 = vsub.f32 %v195, 1.0
      %v212 = vsub.f32 %v196, 1.0
      %v213 = vsub.f32 %v197, 1.0
      %v214 = vsub.f32 %v198, 1.0
      %v215 = vmul.f32 %v199, 0.7853982
      %v216 = vmul.f32 %v200, 0.7853982
      %v217 = vmul.f32 %v201, 0.7853982
      %v218 = vmul.f32 %v202, 0.7853982
      %v219 = vmul.f32 %v203, 0.7853982
      %v220 = vmul.f32 %v204, 0.7853982
      %v221 = vmul.f32 %v205, 0.7853982
      %v222 = vmul.f32 %v206, 0.7853982
      %v223 = vmul.f32 %v207, 0.7853982
      %v224 = vmul.f32 %v208, 0.7853982
      %v225 = vmul.f32 %v209, 0.7853982
      %v226 = vmul.f32 %v210, 0.7853982
      %v227 = vmul.f32 %v211, 0.7853982
      %v228 = vmul.f32 %v212, 0.7853982
      %v229 = vmul.f32 %v213, 0.7853982
      %v230 = vmul.f32 %v214, 0.7853982
      %v231 = vand.u32 2147483647, %v215
      %vm232 = vcmp.le.f32.partialorder %v231, 0.7853982
      %vm233 = vcmp.lt.s32.totalorder %v215, 0
      %v234 = vand.u32 %v215, 2139095040
      %v235 = vshrl.u32 %v234, 23
      %v236 = vsub.s32 %v235, 127
      %v237 = vand.u32 2147483647, %v215
      %v238 = vand.u32 %v237, 8388607
      %v239 = vor.u32 %v238, 8388608
      %v240 = vsub.s32 0, %v239
      %v241 = vadd.s32 %v236, 1
      %vm242 = vcmp.gt.s32.totalorder %v241, 0
      %v243 = vsel %vm242, %v241, 0
      %v244 = vshrl.u32 %v243, 5
      %v245 = vand.u32 %v243, 31
      %v246 = vsub.s32 32, %v245
      %v247 = vshrl.u32 683565275, %v246
      %v248 = vshll.u32 683565275, %v245
      %v249 = vshrl.u32 2475754826, %v246
      %v250 = vor.u32 %v248, %v249
      %v251 = vshll.u32 2475754826, %v245
      %v252 = vshrl.u32 2131351028, %v246
      %v253 = vor.u32 %v251, %v252
      %v254 = vshll.u32 2131351028, %v245
      %v255 = vshrl.u32 2102212464, %v246
      %v256 = vor.u32 %v254, %v255
      %v257 = vshll.u32 2102212464, %v245
      %v258 = vshrl.u32 920167782, %v246
      %v259 = vor.u32 %v257, %v258
      %v260 = vshll.u32 920167782, %v245
      %v261 = vshrl.u32 1326507024, %v246
      %v262 = vor.u32 %v260, %v261
      %vm263 = vcmp.lt.s32.totalorder %v244, 1
      %vm264 = vcmp.lt.s32.totalorder %v244, 2
      %vm265 = vcmp.lt.s32.totalorder %v244, 3
      %vm266 = vcmp.lt.s32.totalorder %v244, 4
      %v267 = vsel %vm263, %v247, %v250
      %v268 = vsel %vm266, %v256, 2102212464
      %v269 = vsel %vm265, %v253, %v268
      %v270 = vsel %vm264, %v267, %v269
      %v271 = vsel %vm263, %v250, %v253
      %v272 = vsel %vm266, %v259, 920167782
      %v273 = vsel %vm265, %v256, %v272
      %v274 = vsel %vm264, %v271, %v273
      %v275 = vsel %vm263, %v253, %v256
      %v276 = vsel %vm266, %v262, 1326507024
      %v277 = vsel %vm265, %v259, %v276
      %v278 = vsel %vm264, %v275, %v277
      %v279 = vshll.u32 %v239, 8
      %v280 = vmul.u32.u64.compose %v279, %v278
      %v281 = vextract.low.u32 %v280
      %v282 = vextract.high.u32 %v280
      %v283 = vmul.u32.u64.compose %v279, %v274
      %v284 = vextract.low.u32 %v283
      %v285 = vextract.high.u32 %v283
      %v286 = vmul.u32 %v279, %v270
      %v287 = vadd.s32 %v282, %v284
      %vm288 = vc.u32 %v282, %v284
      %v289 = vadd.s32 %v285, 1
      %v290 = vsel %vm288, %v289, %v285
      %v291 = vadd.s32 %v286, %v290
      %v292 = vadd.s32 %v291, 536870912
      %v293 = vshrl.u32 %v292, 30
      %v294 = vshll.u32 %v293, 30
      %v295 = vsub.s32 %v291, %v294
      %vm296 = vcmp.lt.s32.totalorder %v295, 0
      %v297 = vsub.s32 0, %v295
      %v298 = vsel %vm296, %v297, %v295
      %v299 = vclz %v298
      %v300 = vsub.s32 %v299, 2
      %vm301 = vcmp.gt.s32.totalorder 0, %v300
      %v302 = vsel %vm301, 0, %v300
      %v303 = vsub.s32 32, %v302
      %v304 = vshll.u32 %v295, %v302
      %v305 = vshrl.u32 %v287, %v303
      %v306 = vor.u32 %v304, %v305
      %v307 = vsub.s32 4294967266, %v302
      %v308 = vadd.s32 %v307, 127
      %v309 = vshll.u32 %v308, 23
      %v310 = vor.u32 4788187, %v309
      %v311 = vand.u32 2147483647, %v310
      %v313 = vcvt.s32.f32 %v306
      %v314 = vmul.f32 %v313, %v311
      %v315 = vxor.u32 %v314, 2147483648
      %v316 = vsel %vm233, %v315, %v314
      %v317 = vsub.s32 4, %v293
      %v318 = vsel %vm233, %v317, %v293
      %v319 = vsel %vm232, %v215, %v316
      %v320 = vsel %vm232, 0, %v318
      %v321 = vcosq.f32.pop %v319
      %v322 = vsinq.f32.pop %v319
      %vm323 = vweird.f32 %v215
      %v324 = vand.u32 %v320, 3
      %vm325 = vcmp.lt.s32.totalorder %v324, 2
      %vm326 = vcmp.eq.s32.totalorder %v324, 0
      %v327 = vxor.u32 %v322, 2147483648
      %v328 = vsel %vm326, %v321, %v327
      %vm329 = vcmp.eq.s32.totalorder %v324, 2
      %v330 = vxor.u32 %v321, 2147483648
      %v331 = vsel %vm329, %v330, %v322
      %v332 = vsel %vm325, %v328, %v331
      %v333 = vsel %vm323, nan, %v332
      %v334 = vand.u32 2147483647, %v216
      %vm335 = vcmp.le.f32.partialorder %v334, 0.7853982
      %vm336 = vcmp.lt.s32.totalorder %v216, 0
      %v337 = vand.u32 %v216, 2139095040
      %v338 = vshrl.u32 %v337, 23
      %v339 = vsub.s32 %v338, 127
      %v340 = vand.u32 2147483647, %v216
      %v341 = vand.u32 %v340, 8388607
      %v342 = vor.u32 %v341, 8388608
      %v343 = vsub.s32 0, %v342
      %v344 = vadd.s32 %v339, 1
      %vm345 = vcmp.gt.s32.totalorder %v344, 0
      %v346 = vsel %vm345, %v344, 0
      %v347 = vshrl.u32 %v346, 5
      %v348 = vand.u32 %v346, 31
      %v349 = vsub.s32 32, %v348
      %v350 = vshrl.u32 683565275, %v349
      %v351 = vshll.u32 683565275, %v348
      %v352 = vshrl.u32 2475754826, %v349
      %v353 = vor.u32 %v351, %v352
      %v354 = vshll.u32 2475754826, %v348
      %v355 = vshrl.u32 2131351028, %v349
      %v356 = vor.u32 %v354, %v355
      %v357 = vshll.u32 2131351028, %v348
      %v358 = vshrl.u32 2102212464, %v349
      %v359 = vor.u32 %v357, %v358
      %v360 = vshll.u32 2102212464, %v348
      %v361 = vshrl.u32 920167782, %v349
      %v362 = vor.u32 %v360, %v361
      %v363 = vshll.u32 920167782, %v348
      %v364 = vshrl.u32 1326507024, %v349
      %v365 = vor.u32 %v363, %v364
      %vm366 = vcmp.lt.s32.totalorder %v347, 1
      %vm367 = vcmp.lt.s32.totalorder %v347, 2
      %vm368 = vcmp.lt.s32.totalorder %v347, 3
      %vm369 = vcmp.lt.s32.totalorder %v347, 4
      %v370 = vsel %vm366, %v350, %v353
      %v371 = vsel %vm369, %v359, 2102212464
      %v372 = vsel %vm368, %v356, %v371
      %v373 = vsel %vm367, %v370, %v372
      %v374 = vsel %vm366, %v353, %v356
      %v375 = vsel %vm369, %v362, 920167782
      %v376 = vsel %vm368, %v359, %v375
      %v377 = vsel %vm367, %v374, %v376
      %v378 = vsel %vm366, %v356, %v359
      %v379 = vsel %vm369, %v365, 1326507024
      %v380 = vsel %vm368, %v362, %v379
      %v381 = vsel %vm367, %v378, %v380
      %v382 = vshll.u32 %v342, 8
      %v383 = vmul.u32.u64.compose %v382, %v381
      %v384 = vextract.low.u32 %v383
      %v385 = vextract.high.u32 %v383
      %v386 = vmul.u32.u64.compose %v382, %v377
      %v387 = vextract.low.u32 %v386
      %v388 = vextract.high.u32 %v386
      %v389 = vmul.u32 %v382, %v373
      %v390 = vadd.s32 %v385, %v387
      %vm391 = vc.u32 %v385, %v387
      %v392 = vadd.s32 %v388, 1
      %v393 = vsel %vm391, %v392, %v388
      %v394 = vadd.s32 %v389, %v393
      %v395 = vadd.s32 %v394, 536870912
      %v396 = vshrl.u32 %v395, 30
      %v397 = vshll.u32 %v396, 30
      %v398 = vsub.s32 %v394, %v397
      %vm399 = vcmp.lt.s32.totalorder %v398, 0
      %v400 = vsub.s32 0, %v398
      %v401 = vsel %vm399, %v400, %v398
      %v402 = vclz %v401
      %v403 = vsub.s32 %v402, 2
      %vm404 = vcmp.gt.s32.totalorder 0, %v403
      %v405 = vsel %vm404, 0, %v403
      %v406 = vsub.s32 32, %v405
      %v407 = vshll.u32 %v398, %v405
      %v408 = vshrl.u32 %v390, %v406
      %v409 = vor.u32 %v407, %v408
      %v410 = vsub.s32 4294967266, %v405
      %v411 = vadd.s32 %v410, 127
      %v412 = vshll.u32 %v411, 23
      %v413 = vor.u32 4788187, %v412
      %v414 = vand.u32 2147483647, %v413
      %v416 = vcvt.s32.f32 %v409
      %v417 = vmul.f32 %v416, %v414
      %v418 = vxor.u32 %v417, 2147483648
      %v419 = vsel %vm336, %v418, %v417
      %v420 = vsub.s32 4, %v396
      %v421 = vsel %vm336, %v420, %v396
      %v422 = vsel %vm335, %v216, %v419
      %v423 = vsel %vm335, 0, %v421
      %v424 = vcosq.f32.pop %v422
      %v425 = vsinq.f32.pop %v422
      %vm426 = vweird.f32 %v216
      %v427 = vand.u32 %v423, 3
      %vm428 = vcmp.lt.s32.totalorder %v427, 2
      %vm429 = vcmp.eq.s32.totalorder %v427, 0
      %v430 = vxor.u32 %v425, 2147483648
      %v431 = vsel %vm429, %v424, %v430
      %vm432 = vcmp.eq.s32.totalorder %v427, 2
      %v433 = vxor.u32 %v424, 2147483648
      %v434 = vsel %vm432, %v433, %v425
      %v435 = vsel %vm428, %v431, %v434
      %v436 = vsel %vm426, nan, %v435
      %v437 = vand.u32 2147483647, %v217
      %vm438 = vcmp.le.f32.partialorder %v437, 0.7853982
      %vm439 = vcmp.lt.s32.totalorder %v217, 0
      %v440 = vand.u32 %v217, 2139095040
      %v441 = vshrl.u32 %v440, 23
      %v442 = vsub.s32 %v441, 127
      %v443 = vand.u32 2147483647, %v217
      %v444 = vand.u32 %v443, 8388607
      %v445 = vor.u32 %v444, 8388608
      %v446 = vsub.s32 0, %v445
      %v447 = vadd.s32 %v442, 1
      %vm448 = vcmp.gt.s32.totalorder %v447, 0
      %v449 = vsel %vm448, %v447, 0
      %v450 = vshrl.u32 %v449, 5
      %v451 = vand.u32 %v449, 31
      %v452 = vsub.s32 32, %v451
      %v453 = vshrl.u32 683565275, %v452
      %v454 = vshll.u32 683565275, %v451
      %v455 = vshrl.u32 2475754826, %v452
      %v456 = vor.u32 %v454, %v455
      %v457 = vshll.u32 2475754826, %v451
      %v458 = vshrl.u32 2131351028, %v452
      %v459 = vor.u32 %v457, %v458
      %v460 = vshll.u32 2131351028, %v451
      %v461 = vshrl.u32 2102212464, %v452
      %v462 = vor.u32 %v460, %v461
      %v463 = vshll.u32 2102212464, %v451
      %v464 = vshrl.u32 920167782, %v452
      %v465 = vor.u32 %v463, %v464
      %v466 = vshll.u32 920167782, %v451
      %v467 = vshrl.u32 1326507024, %v452
      %v468 = vor.u32 %v466, %v467
      %vm469 = vcmp.lt.s32.totalorder %v450, 1
      %vm470 = vcmp.lt.s32.totalorder %v450, 2
      %vm471 = vcmp.lt.s32.totalorder %v450, 3
      %vm472 = vcmp.lt.s32.totalorder %v450, 4
      %v473 = vsel %vm469, %v453, %v456
      %v474 = vsel %vm472, %v462, 2102212464
      %v475 = vsel %vm471, %v459, %v474
      %v476 = vsel %vm470, %v473, %v475
      %v477 = vsel %vm469, %v456, %v459
      %v478 = vsel %vm472, %v465, 920167782
      %v479 = vsel %vm471, %v462, %v478
      %v480 = vsel %vm470, %v477, %v479
      %v481 = vsel %vm469, %v459, %v462
      %v482 = vsel %vm472, %v468, 1326507024
      %v483 = vsel %vm471, %v465, %v482
      %v484 = vsel %vm470, %v481, %v483
      %v485 = vshll.u32 %v445, 8
      %v486 = vmul.u32.u64.compose %v485, %v484
      %v487 = vextract.low.u32 %v486
      %v488 = vextract.high.u32 %v486
      %v489 = vmul.u32.u64.compose %v485, %v480
      %v490 = vextract.low.u32 %v489
      %v491 = vextract.high.u32 %v489
      %v492 = vmul.u32 %v485, %v476
      %v493 = vadd.s32 %v488, %v490
      %vm494 = vc.u32 %v488, %v490
      %v495 = vadd.s32 %v491, 1
      %v496 = vsel %vm494, %v495, %v491
      %v497 = vadd.s32 %v492, %v496
      %v498 = vadd.s32 %v497, 536870912
      %v499 = vshrl.u32 %v498, 30
      %v500 = vshll.u32 %v499, 30
      %v501 = vsub.s32 %v497, %v500
      %vm502 = vcmp.lt.s32.totalorder %v501, 0
      %v503 = vsub.s32 0, %v501
      %v504 = vsel %vm502, %v503, %v501
      %v505 = vclz %v504
      %v506 = vsub.s32 %v505, 2
      %vm507 = vcmp.gt.s32.totalorder 0, %v506
      %v508 = vsel %vm507, 0, %v506
      %v509 = vsub.s32 32, %v508
      %v510 = vshll.u32 %v501, %v508
      %v511 = vshrl.u32 %v493, %v509
      %v512 = vor.u32 %v510, %v511
      %v513 = vsub.s32 4294967266, %v508
      %v514 = vadd.s32 %v513, 127
      %v515 = vshll.u32 %v514, 23
      %v516 = vor.u32 4788187, %v515
      %v517 = vand.u32 2147483647, %v516
      %v519 = vcvt.s32.f32 %v512
      %v520 = vmul.f32 %v519, %v517
      %v521 = vxor.u32 %v520, 2147483648
      %v522 = vsel %vm439, %v521, %v520
      %v523 = vsub.s32 4, %v499
      %v524 = vsel %vm439, %v523, %v499
      %v525 = vsel %vm438, %v217, %v522
      %v526 = vsel %vm438, 0, %v524
      %v527 = vcosq.f32.pop %v525
      %v528 = vsinq.f32.pop %v525
      %vm529 = vweird.f32 %v217
      %v530 = vand.u32 %v526, 3
      %vm531 = vcmp.lt.s32.totalorder %v530, 2
      %vm532 = vcmp.eq.s32.totalorder %v530, 0
      %v533 = vxor.u32 %v528, 2147483648
      %v534 = vsel %vm532, %v527, %v533
      %vm535 = vcmp.eq.s32.totalorder %v530, 2
      %v536 = vxor.u32 %v527, 2147483648
      %v537 = vsel %vm535, %v536, %v528
      %v538 = vsel %vm531, %v534, %v537
      %v539 = vsel %vm529, nan, %v538
      %v540 = vand.u32 2147483647, %v218
      %vm541 = vcmp.le.f32.partialorder %v540, 0.7853982
      %vm542 = vcmp.lt.s32.totalorder %v218, 0
      %v543 = vand.u32 %v218, 2139095040
      %v544 = vshrl.u32 %v543, 23
      %v545 = vsub.s32 %v544, 127
      %v546 = vand.u32 2147483647, %v218
      %v547 = vand.u32 %v546, 8388607
      %v548 = vor.u32 %v547, 8388608
      %v549 = vsub.s32 0, %v548
      %v550 = vadd.s32 %v545, 1
      %vm551 = vcmp.gt.s32.totalorder %v550, 0
      %v552 = vsel %vm551, %v550, 0
      %v553 = vshrl.u32 %v552, 5
      %v554 = vand.u32 %v552, 31
      %v555 = vsub.s32 32, %v554
      %v556 = vshrl.u32 683565275, %v555
      %v557 = vshll.u32 683565275, %v554
      %v558 = vshrl.u32 2475754826, %v555
      %v559 = vor.u32 %v557, %v558
      %v560 = vshll.u32 2475754826, %v554
      %v561 = vshrl.u32 2131351028, %v555
      %v562 = vor.u32 %v560, %v561
      %v563 = vshll.u32 2131351028, %v554
      %v564 = vshrl.u32 2102212464, %v555
      %v565 = vor.u32 %v563, %v564
      %v566 = vshll.u32 2102212464, %v554
      %v567 = vshrl.u32 920167782, %v555
      %v568 = vor.u32 %v566, %v567
      %v569 = vshll.u32 920167782, %v554
      %v570 = vshrl.u32 1326507024, %v555
      %v571 = vor.u32 %v569, %v570
      %vm572 = vcmp.lt.s32.totalorder %v553, 1
      %vm573 = vcmp.lt.s32.totalorder %v553, 2
      %vm574 = vcmp.lt.s32.totalorder %v553, 3
      %vm575 = vcmp.lt.s32.totalorder %v553, 4
      %v576 = vsel %vm572, %v556, %v559
      %v577 = vsel %vm575, %v565, 2102212464
      %v578 = vsel %vm574, %v562, %v577
      %v579 = vsel %vm573, %v576, %v578
      %v580 = vsel %vm572, %v559, %v562
      %v581 = vsel %vm575, %v568, 920167782
      %v582 = vsel %vm574, %v565, %v581
      %v583 = vsel %vm573, %v580, %v582
      %v584 = vsel %vm572, %v562, %v565
      %v585 = vsel %vm575, %v571, 1326507024
      %v586 = vsel %vm574, %v568, %v585
      %v587 = vsel %vm573, %v584, %v586
      %v588 = vshll.u32 %v548, 8
      %v589 = vmul.u32.u64.compose %v588, %v587
      %v590 = vextract.low.u32 %v589
      %v591 = vextract.high.u32 %v589
      %v592 = vmul.u32.u64.compose %v588, %v583
      %v593 = vextract.low.u32 %v592
      %v594 = vextract.high.u32 %v592
      %v595 = vmul.u32 %v588, %v579
      %v596 = vadd.s32 %v591, %v593
      %vm597 = vc.u32 %v591, %v593
      %v598 = vadd.s32 %v594, 1
      %v599 = vsel %vm597, %v598, %v594
      %v600 = vadd.s32 %v595, %v599
      %v601 = vadd.s32 %v600, 536870912
      %v602 = vshrl.u32 %v601, 30
      %v603 = vshll.u32 %v602, 30
      %v604 = vsub.s32 %v600, %v603
      %vm605 = vcmp.lt.s32.totalorder %v604, 0
      %v606 = vsub.s32 0, %v604
      %v607 = vsel %vm605, %v606, %v604
      %v608 = vclz %v607
      %v609 = vsub.s32 %v608, 2
      %vm610 = vcmp.gt.s32.totalorder 0, %v609
      %v611 = vsel %vm610, 0, %v609
      %v612 = vsub.s32 32, %v611
      %v613 = vshll.u32 %v604, %v611
      %v614 = vshrl.u32 %v596, %v612
      %v615 = vor.u32 %v613, %v614
      %v616 = vsub.s32 4294967266, %v611
      %v617 = vadd.s32 %v616, 127
      %v618 = vshll.u32 %v617, 23
      %v619 = vor.u32 4788187, %v618
      %v620 = vand.u32 2147483647, %v619
      %v622 = vcvt.s32.f32 %v615
      %v623 = vmul.f32 %v622, %v620
      %v624 = vxor.u32 %v623, 2147483648
      %v625 = vsel %vm542, %v624, %v623
      %v626 = vsub.s32 4, %v602
      %v627 = vsel %vm542, %v626, %v602
      %v628 = vsel %vm541, %v218, %v625
      %v629 = vsel %vm541, 0, %v627
      %v630 = vcosq.f32.pop %v628
      %v631 = vsinq.f32.pop %v628
      %vm632 = vweird.f32 %v218
      %v633 = vand.u32 %v629, 3
      %vm634 = vcmp.lt.s32.totalorder %v633, 2
      %vm635 = vcmp.eq.s32.totalorder %v633, 0
      %v636 = vxor.u32 %v631, 2147483648
      %v637 = vsel %vm635, %v630, %v636
      %vm638 = vcmp.eq.s32.totalorder %v633, 2
      %v639 = vxor.u32 %v630, 2147483648
      %v640 = vsel %vm638, %v639, %v631
      %v641 = vsel %vm634, %v637, %v640
      %v642 = vsel %vm632, nan, %v641
      %v643 = vand.u32 2147483647, %v219
      %vm644 = vcmp.le.f32.partialorder %v643, 0.7853982
      %vm645 = vcmp.lt.s32.totalorder %v219, 0
      %v646 = vand.u32 %v219, 2139095040
      %v647 = vshrl.u32 %v646, 23
      %v648 = vsub.s32 %v647, 127
      %v649 = vand.u32 2147483647, %v219
      %v650 = vand.u32 %v649, 8388607
      %v651 = vor.u32 %v650, 8388608
      %v652 = vsub.s32 0, %v651
      %v653 = vadd.s32 %v648, 1
      %vm654 = vcmp.gt.s32.totalorder %v653, 0
      %v655 = vsel %vm654, %v653, 0
      %v656 = vshrl.u32 %v655, 5
      %v657 = vand.u32 %v655, 31
      %v658 = vsub.s32 32, %v657
      %v659 = vshrl.u32 683565275, %v658
      %v660 = vshll.u32 683565275, %v657
      %v661 = vshrl.u32 2475754826, %v658
      %v662 = vor.u32 %v660, %v661
      %v663 = vshll.u32 2475754826, %v657
      %v664 = vshrl.u32 2131351028, %v658
      %v665 = vor.u32 %v663, %v664
      %v666 = vshll.u32 2131351028, %v657
      %v667 = vshrl.u32 2102212464, %v658
      %v668 = vor.u32 %v666, %v667
      %v669 = vshll.u32 2102212464, %v657
      %v670 = vshrl.u32 920167782, %v658
      %v671 = vor.u32 %v669, %v670
      %v672 = vshll.u32 920167782, %v657
      %v673 = vshrl.u32 1326507024, %v658
      %v674 = vor.u32 %v672, %v673
      %vm675 = vcmp.lt.s32.totalorder %v656, 1
      %vm676 = vcmp.lt.s32.totalorder %v656, 2
      %vm677 = vcmp.lt.s32.totalorder %v656, 3
      %vm678 = vcmp.lt.s32.totalorder %v656, 4
      %v679 = vsel %vm675, %v659, %v662
      %v680 = vsel %vm678, %v668, 2102212464
      %v681 = vsel %vm677, %v665, %v680
      %v682 = vsel %vm676, %v679, %v681
      %v683 = vsel %vm675, %v662, %v665
      %v684 = vsel %vm678, %v671, 920167782
      %v685 = vsel %vm677, %v668, %v684
      %v686 = vsel %vm676, %v683, %v685
      %v687 = vsel %vm675, %v665, %v668
      %v688 = vsel %vm678, %v674, 1326507024
      %v689 = vsel %vm677, %v671, %v688
      %v690 = vsel %vm676, %v687, %v689
      %v691 = vshll.u32 %v651, 8
      %v692 = vmul.u32.u64.compose %v691, %v690
      %v693 = vextract.low.u32 %v692
      %v694 = vextract.high.u32 %v692
      %v695 = vmul.u32.u64.compose %v691, %v686
      %v696 = vextract.low.u32 %v695
      %v697 = vextract.high.u32 %v695
      %v698 = vmul.u32 %v691, %v682
      %v699 = vadd.s32 %v694, %v696
      %vm700 = vc.u32 %v694, %v696
      %v701 = vadd.s32 %v697, 1
      %v702 = vsel %vm700, %v701, %v697
      %v703 = vadd.s32 %v698, %v702
      %v704 = vadd.s32 %v703, 536870912
      %v705 = vshrl.u32 %v704, 30
      %v706 = vshll.u32 %v705, 30
      %v707 = vsub.s32 %v703, %v706
      %vm708 = vcmp.lt.s32.totalorder %v707, 0
      %v709 = vsub.s32 0, %v707
      %v710 = vsel %vm708, %v709, %v707
      %v711 = vclz %v710
      %v712 = vsub.s32 %v711, 2
      %vm713 = vcmp.gt.s32.totalorder 0, %v712
      %v714 = vsel %vm713, 0, %v712
      %v715 = vsub.s32 32, %v714
      %v716 = vshll.u32 %v707, %v714
      %v717 = vshrl.u32 %v699, %v715
      %v718 = vor.u32 %v716, %v717
      %v719 = vsub.s32 4294967266, %v714
      %v720 = vadd.s32 %v719, 127
      %v721 = vshll.u32 %v720, 23
      %v722 = vor.u32 4788187, %v721
      %v723 = vand.u32 2147483647, %v722
      %v725 = vcvt.s32.f32 %v718
      %v726 = vmul.f32 %v725, %v723
      %v727 = vxor.u32 %v726, 2147483648
      %v728 = vsel %vm645, %v727, %v726
      %v729 = vsub.s32 4, %v705
      %v730 = vsel %vm645, %v729, %v705
      %v731 = vsel %vm644, %v219, %v728
      %v732 = vsel %vm644, 0, %v730
      %v733 = vcosq.f32.pop %v731
      %v734 = vsinq.f32.pop %v731
      %vm735 = vweird.f32 %v219
      %v736 = vand.u32 %v732, 3
      %vm737 = vcmp.lt.s32.totalorder %v736, 2
      %vm738 = vcmp.eq.s32.totalorder %v736, 0
      %v739 = vxor.u32 %v734, 2147483648
      %v740 = vsel %vm738, %v733, %v739
      %vm741 = vcmp.eq.s32.totalorder %v736, 2
      %v742 = vxor.u32 %v733, 2147483648
      %v743 = vsel %vm741, %v742, %v734
      %v744 = vsel %vm737, %v740, %v743
      %v745 = vsel %vm735, nan, %v744
      %v746 = vand.u32 2147483647, %v220
      %vm747 = vcmp.le.f32.partialorder %v746, 0.7853982
      %vm748 = vcmp.lt.s32.totalorder %v220, 0
      %v749 = vand.u32 %v220, 2139095040
      %v750 = vshrl.u32 %v749, 23
      %v751 = vsub.s32 %v750, 127
      %v752 = vand.u32 2147483647, %v220
      %v753 = vand.u32 %v752, 8388607
      %v754 = vor.u32 %v753, 8388608
      %v755 = vsub.s32 0, %v754
      %v756 = vadd.s32 %v751, 1
      %vm757 = vcmp.gt.s32.totalorder %v756, 0
      %v758 = vsel %vm757, %v756, 0
      %v759 = vshrl.u32 %v758, 5
      %v760 = vand.u32 %v758, 31
      %v761 = vsub.s32 32, %v760
      %v762 = vshrl.u32 683565275, %v761
      %v763 = vshll.u32 683565275, %v760
      %v764 = vshrl.u32 2475754826, %v761
      %v765 = vor.u32 %v763, %v764
      %v766 = vshll.u32 2475754826, %v760
      %v767 = vshrl.u32 2131351028, %v761
      %v768 = vor.u32 %v766, %v767
      %v769 = vshll.u32 2131351028, %v760
      %v770 = vshrl.u32 2102212464, %v761
      %v771 = vor.u32 %v769, %v770
      %v772 = vshll.u32 2102212464, %v760
      %v773 = vshrl.u32 920167782, %v761
      %v774 = vor.u32 %v772, %v773
      %v775 = vshll.u32 920167782, %v760
      %v776 = vshrl.u32 1326507024, %v761
      %v777 = vor.u32 %v775, %v776
      %vm778 = vcmp.lt.s32.totalorder %v759, 1
      %vm779 = vcmp.lt.s32.totalorder %v759, 2
      %vm780 = vcmp.lt.s32.totalorder %v759, 3
      %vm781 = vcmp.lt.s32.totalorder %v759, 4
      %v782 = vsel %vm778, %v762, %v765
      %v783 = vsel %vm781, %v771, 2102212464
      %v784 = vsel %vm780, %v768, %v783
      %v785 = vsel %vm779, %v782, %v784
      %v786 = vsel %vm778, %v765, %v768
      %v787 = vsel %vm781, %v774, 920167782
      %v788 = vsel %vm780, %v771, %v787
      %v789 = vsel %vm779, %v786, %v788
      %v790 = vsel %vm778, %v768, %v771
      %v791 = vsel %vm781, %v777, 1326507024
      %v792 = vsel %vm780, %v774, %v791
      %v793 = vsel %vm779, %v790, %v792
      %v794 = vshll.u32 %v754, 8
      %v795 = vmul.u32.u64.compose %v794, %v793
      %v796 = vextract.low.u32 %v795
      %v797 = vextract.high.u32 %v795
      %v798 = vmul.u32.u64.compose %v794, %v789
      %v799 = vextract.low.u32 %v798
      %v800 = vextract.high.u32 %v798
      %v801 = vmul.u32 %v794, %v785
      %v802 = vadd.s32 %v797, %v799
      %vm803 = vc.u32 %v797, %v799
      %v804 = vadd.s32 %v800, 1
      %v805 = vsel %vm803, %v804, %v800
      %v806 = vadd.s32 %v801, %v805
      %v807 = vadd.s32 %v806, 536870912
      %v808 = vshrl.u32 %v807, 30
      %v809 = vshll.u32 %v808, 30
      %v810 = vsub.s32 %v806, %v809
      %vm811 = vcmp.lt.s32.totalorder %v810, 0
      %v812 = vsub.s32 0, %v810
      %v813 = vsel %vm811, %v812, %v810
      %v814 = vclz %v813
      %v815 = vsub.s32 %v814, 2
      %vm816 = vcmp.gt.s32.totalorder 0, %v815
      %v817 = vsel %vm816, 0, %v815
      %v818 = vsub.s32 32, %v817
      %v819 = vshll.u32 %v810, %v817
      %v820 = vshrl.u32 %v802, %v818
      %v821 = vor.u32 %v819, %v820
      %v822 = vsub.s32 4294967266, %v817
      %v823 = vadd.s32 %v822, 127
      %v824 = vshll.u32 %v823, 23
      %v825 = vor.u32 4788187, %v824
      %v826 = vand.u32 2147483647, %v825
      %v828 = vcvt.s32.f32 %v821
      %v829 = vmul.f32 %v828, %v826
      %v830 = vxor.u32 %v829, 2147483648
      %v831 = vsel %vm748, %v830, %v829
      %v832 = vsub.s32 4, %v808
      %v833 = vsel %vm748, %v832, %v808
      %v834 = vsel %vm747, %v220, %v831
      %v835 = vsel %vm747, 0, %v833
      %v836 = vcosq.f32.pop %v834
      %v837 = vsinq.f32.pop %v834
      %vm838 = vweird.f32 %v220
      %v839 = vand.u32 %v835, 3
      %vm840 = vcmp.lt.s32.totalorder %v839, 2
      %vm841 = vcmp.eq.s32.totalorder %v839, 0
      %v842 = vxor.u32 %v837, 2147483648
      %v843 = vsel %vm841, %v836, %v842
      %vm844 = vcmp.eq.s32.totalorder %v839, 2
      %v845 = vxor.u32 %v836, 2147483648
      %v846 = vsel %vm844, %v845, %v837
      %v847 = vsel %vm840, %v843, %v846
      %v848 = vsel %vm838, nan, %v847
      %v849 = vand.u32 2147483647, %v221
      %vm850 = vcmp.le.f32.partialorder %v849, 0.7853982
      %vm851 = vcmp.lt.s32.totalorder %v221, 0
      %v852 = vand.u32 %v221, 2139095040
      %v853 = vshrl.u32 %v852, 23
      %v854 = vsub.s32 %v853, 127
      %v855 = vand.u32 2147483647, %v221
      %v856 = vand.u32 %v855, 8388607
      %v857 = vor.u32 %v856, 8388608
      %v858 = vsub.s32 0, %v857
      %v859 = vadd.s32 %v854, 1
      %vm860 = vcmp.gt.s32.totalorder %v859, 0
      %v861 = vsel %vm860, %v859, 0
      %v862 = vshrl.u32 %v861, 5
      %v863 = vand.u32 %v861, 31
      %v864 = vsub.s32 32, %v863
      %v865 = vshrl.u32 683565275, %v864
      %v866 = vshll.u32 683565275, %v863
      %v867 = vshrl.u32 2475754826, %v864
      %v868 = vor.u32 %v866, %v867
      %v869 = vshll.u32 2475754826, %v863
      %v870 = vshrl.u32 2131351028, %v864
      %v871 = vor.u32 %v869, %v870
      %v872 = vshll.u32 2131351028, %v863
      %v873 = vshrl.u32 2102212464, %v864
      %v874 = vor.u32 %v872, %v873
      %v875 = vshll.u32 2102212464, %v863
      %v876 = vshrl.u32 920167782, %v864
      %v877 = vor.u32 %v875, %v876
      %v878 = vshll.u32 920167782, %v863
      %v879 = vshrl.u32 1326507024, %v864
      %v880 = vor.u32 %v878, %v879
      %vm881 = vcmp.lt.s32.totalorder %v862, 1
      %vm882 = vcmp.lt.s32.totalorder %v862, 2
      %vm883 = vcmp.lt.s32.totalorder %v862, 3
      %vm884 = vcmp.lt.s32.totalorder %v862, 4
      %v885 = vsel %vm881, %v865, %v868
      %v886 = vsel %vm884, %v874, 2102212464
      %v887 = vsel %vm883, %v871, %v886
      %v888 = vsel %vm882, %v885, %v887
      %v889 = vsel %vm881, %v868, %v871
      %v890 = vsel %vm884, %v877, 920167782
      %v891 = vsel %vm883, %v874, %v890
      %v892 = vsel %vm882, %v889, %v891
      %v893 = vsel %vm881, %v871, %v874
      %v894 = vsel %vm884, %v880, 1326507024
      %v895 = vsel %vm883, %v877, %v894
      %v896 = vsel %vm882, %v893, %v895
      %v897 = vshll.u32 %v857, 8
      %v898 = vmul.u32.u64.compose %v897, %v896
      %v899 = vextract.low.u32 %v898
      %v900 = vextract.high.u32 %v898
      %v901 = vmul.u32.u64.compose %v897, %v892
      %v902 = vextract.low.u32 %v901
      %v903 = vextract.high.u32 %v901
      %v904 = vmul.u32 %v897, %v888
      %v905 = vadd.s32 %v900, %v902
      %vm906 = vc.u32 %v900, %v902
      %v907 = vadd.s32 %v903, 1
      %v908 = vsel %vm906, %v907, %v903
      %v909 = vadd.s32 %v904, %v908
      %v910 = vadd.s32 %v909, 536870912
      %v911 = vshrl.u32 %v910, 30
      %v912 = vshll.u32 %v911, 30
      %v913 = vsub.s32 %v909, %v912
      %vm914 = vcmp.lt.s32.totalorder %v913, 0
      %v915 = vsub.s32 0, %v913
      %v916 = vsel %vm914, %v915, %v913
      %v917 = vclz %v916
      %v918 = vsub.s32 %v917, 2
      %vm919 = vcmp.gt.s32.totalorder 0, %v918
      %v920 = vsel %vm919, 0, %v918
      %v921 = vsub.s32 32, %v920
      %v922 = vshll.u32 %v913, %v920
      %v923 = vshrl.u32 %v905, %v921
      %v924 = vor.u32 %v922, %v923
      %v925 = vsub.s32 4294967266, %v920
      %v926 = vadd.s32 %v925, 127
      %v927 = vshll.u32 %v926, 23
      %v928 = vor.u32 4788187, %v927
      %v929 = vand.u32 2147483647, %v928
      %v931 = vcvt.s32.f32 %v924
      %v932 = vmul.f32 %v931, %v929
      %v933 = vxor.u32 %v932, 2147483648
      %v934 = vsel %vm851, %v933, %v932
      %v935 = vsub.s32 4, %v911
      %v936 = vsel %vm851, %v935, %v911
      %v937 = vsel %vm850, %v221, %v934
      %v938 = vsel %vm850, 0, %v936
      %v939 = vcosq.f32.pop %v937
      %v940 = vsinq.f32.pop %v937
      %vm941 = vweird.f32 %v221
      %v942 = vand.u32 %v938, 3
      %vm943 = vcmp.lt.s32.totalorder %v942, 2
      %vm944 = vcmp.eq.s32.totalorder %v942, 0
      %v945 = vxor.u32 %v940, 2147483648
      %v946 = vsel %vm944, %v939, %v945
      %vm947 = vcmp.eq.s32.totalorder %v942, 2
      %v948 = vxor.u32 %v939, 2147483648
      %v949 = vsel %vm947, %v948, %v940
      %v950 = vsel %vm943, %v946, %v949
      %v951 = vsel %vm941, nan, %v950
      %v952 = vand.u32 2147483647, %v222
      %vm953 = vcmp.le.f32.partialorder %v952, 0.7853982
      %vm954 = vcmp.lt.s32.totalorder %v222, 0
      %v955 = vand.u32 %v222, 2139095040
      %v956 = vshrl.u32 %v955, 23
      %v957 = vsub.s32 %v956, 127
      %v958 = vand.u32 2147483647, %v222
      %v959 = vand.u32 %v958, 8388607
      %v960 = vor.u32 %v959, 8388608
      %v961 = vsub.s32 0, %v960
      %v962 = vadd.s32 %v957, 1
      %vm963 = vcmp.gt.s32.totalorder %v962, 0
      %v964 = vsel %vm963, %v962, 0
      %v965 = vshrl.u32 %v964, 5
      %v966 = vand.u32 %v964, 31
      %v967 = vsub.s32 32, %v966
      %v968 = vshrl.u32 683565275, %v967
      %v969 = vshll.u32 683565275, %v966
      %v970 = vshrl.u32 2475754826, %v967
      %v971 = vor.u32 %v969, %v970
      %v972 = vshll.u32 2475754826, %v966
      %v973 = vshrl.u32 2131351028, %v967
      %v974 = vor.u32 %v972, %v973
      %v975 = vshll.u32 2131351028, %v966
      %v976 = vshrl.u32 2102212464, %v967
      %v977 = vor.u32 %v975, %v976
      %v978 = vshll.u32 2102212464, %v966
      %v979 = vshrl.u32 920167782, %v967
      %v980 = vor.u32 %v978, %v979
      %v981 = vshll.u32 920167782, %v966
      %v982 = vshrl.u32 1326507024, %v967
      %v983 = vor.u32 %v981, %v982
      %vm984 = vcmp.lt.s32.totalorder %v965, 1
      %vm985 = vcmp.lt.s32.totalorder %v965, 2
      %vm986 = vcmp.lt.s32.totalorder %v965, 3
      %vm987 = vcmp.lt.s32.totalorder %v965, 4
      %v988 = vsel %vm984, %v968, %v971
      %v989 = vsel %vm987, %v977, 2102212464
      %v990 = vsel %vm986, %v974, %v989
      %v991 = vsel %vm985, %v988, %v990
      %v992 = vsel %vm984, %v971, %v974
      %v993 = vsel %vm987, %v980, 920167782
      %v994 = vsel %vm986, %v977, %v993
      %v995 = vsel %vm985, %v992, %v994
      %v996 = vsel %vm984, %v974, %v977
      %v997 = vsel %vm987, %v983, 1326507024
      %v998 = vsel %vm986, %v980, %v997
      %v999 = vsel %vm985, %v996, %v998
      %v1000 = vshll.u32 %v960, 8
      %v1001 = vmul.u32.u64.compose %v1000, %v999
      %v1002 = vextract.low.u32 %v1001
      %v1003 = vextract.high.u32 %v1001
      %v1004 = vmul.u32.u64.compose %v1000, %v995
      %v1005 = vextract.low.u32 %v1004
      %v1006 = vextract.high.u32 %v1004
      %v1007 = vmul.u32 %v1000, %v991
      %v1008 = vadd.s32 %v1003, %v1005
      %vm1009 = vc.u32 %v1003, %v1005
      %v1010 = vadd.s32 %v1006, 1
      %v1011 = vsel %vm1009, %v1010, %v1006
      %v1012 = vadd.s32 %v1007, %v1011
      %v1013 = vadd.s32 %v1012, 536870912
      %v1014 = vshrl.u32 %v1013, 30
      %v1015 = vshll.u32 %v1014, 30
      %v1016 = vsub.s32 %v1012, %v1015
      %vm1017 = vcmp.lt.s32.totalorder %v1016, 0
      %v1018 = vsub.s32 0, %v1016
      %v1019 = vsel %vm1017, %v1018, %v1016
      %v1020 = vclz %v1019
      %v1021 = vsub.s32 %v1020, 2
      %vm1022 = vcmp.gt.s32.totalorder 0, %v1021
      %v1023 = vsel %vm1022, 0, %v1021
      %v1024 = vsub.s32 32, %v1023
      %v1025 = vshll.u32 %v1016, %v1023
      %v1026 = vshrl.u32 %v1008, %v1024
      %v1027 = vor.u32 %v1025, %v1026
      %v1028 = vsub.s32 4294967266, %v1023
      %v1029 = vadd.s32 %v1028, 127
      %v1030 = vshll.u32 %v1029, 23
      %v1031 = vor.u32 4788187, %v1030
      %v1032 = vand.u32 2147483647, %v1031
      %v1034 = vcvt.s32.f32 %v1027
      %v1035 = vmul.f32 %v1034, %v1032
      %v1036 = vxor.u32 %v1035, 2147483648
      %v1037 = vsel %vm954, %v1036, %v1035
      %v1038 = vsub.s32 4, %v1014
      %v1039 = vsel %vm954, %v1038, %v1014
      %v1040 = vsel %vm953, %v222, %v1037
      %v1041 = vsel %vm953, 0, %v1039
      %v1042 = vcosq.f32.pop %v1040
      %v1043 = vsinq.f32.pop %v1040
      %vm1044 = vweird.f32 %v222
      %v1045 = vand.u32 %v1041, 3
      %vm1046 = vcmp.lt.s32.totalorder %v1045, 2
      %vm1047 = vcmp.eq.s32.totalorder %v1045, 0
      %v1048 = vxor.u32 %v1043, 2147483648
      %v1049 = vsel %vm1047, %v1042, %v1048
      %vm1050 = vcmp.eq.s32.totalorder %v1045, 2
      %v1051 = vxor.u32 %v1042, 2147483648
      %v1052 = vsel %vm1050, %v1051, %v1043
      %v1053 = vsel %vm1046, %v1049, %v1052
      %v1054 = vsel %vm1044, nan, %v1053
      %v1055 = vand.u32 2147483647, %v223
      %vm1056 = vcmp.le.f32.partialorder %v1055, 0.7853982
      %vm1057 = vcmp.lt.s32.totalorder %v223, 0
      %v1058 = vand.u32 %v223, 2139095040
      %v1059 = vshrl.u32 %v1058, 23
      %v1060 = vsub.s32 %v1059, 127
      %v1061 = vand.u32 2147483647, %v223
      %v1062 = vand.u32 %v1061, 8388607
      %v1063 = vor.u32 %v1062, 8388608
      %v1064 = vsub.s32 0, %v1063
      %v1065 = vadd.s32 %v1060, 1
      %vm1066 = vcmp.gt.s32.totalorder %v1065, 0
      %v1067 = vsel %vm1066, %v1065, 0
      %v1068 = vshrl.u32 %v1067, 5
      %v1069 = vand.u32 %v1067, 31
      %v1070 = vsub.s32 32, %v1069
      %v1071 = vshrl.u32 683565275, %v1070
      %v1072 = vshll.u32 683565275, %v1069
      %v1073 = vshrl.u32 2475754826, %v1070
      %v1074 = vor.u32 %v1072, %v1073
      %v1075 = vshll.u32 2475754826, %v1069
      %v1076 = vshrl.u32 2131351028, %v1070
      %v1077 = vor.u32 %v1075, %v1076
      %v1078 = vshll.u32 2131351028, %v1069
      %v1079 = vshrl.u32 2102212464, %v1070
      %v1080 = vor.u32 %v1078, %v1079
      %v1081 = vshll.u32 2102212464, %v1069
      %v1082 = vshrl.u32 920167782, %v1070
      %v1083 = vor.u32 %v1081, %v1082
      %v1084 = vshll.u32 920167782, %v1069
      %v1085 = vshrl.u32 1326507024, %v1070
      %v1086 = vor.u32 %v1084, %v1085
      %vm1087 = vcmp.lt.s32.totalorder %v1068, 1
      %vm1088 = vcmp.lt.s32.totalorder %v1068, 2
      %vm1089 = vcmp.lt.s32.totalorder %v1068, 3
      %vm1090 = vcmp.lt.s32.totalorder %v1068, 4
      %v1091 = vsel %vm1087, %v1071, %v1074
      %v1092 = vsel %vm1090, %v1080, 2102212464
      %v1093 = vsel %vm1089, %v1077, %v1092
      %v1094 = vsel %vm1088, %v1091, %v1093
      %v1095 = vsel %vm1087, %v1074, %v1077
      %v1096 = vsel %vm1090, %v1083, 920167782
      %v1097 = vsel %vm1089, %v1080, %v1096
      %v1098 = vsel %vm1088, %v1095, %v1097
      %v1099 = vsel %vm1087, %v1077, %v1080
      %v1100 = vsel %vm1090, %v1086, 1326507024
      %v1101 = vsel %vm1089, %v1083, %v1100
      %v1102 = vsel %vm1088, %v1099, %v1101
      %v1103 = vshll.u32 %v1063, 8
      %v1104 = vmul.u32.u64.compose %v1103, %v1102
      %v1105 = vextract.low.u32 %v1104
      %v1106 = vextract.high.u32 %v1104
      %v1107 = vmul.u32.u64.compose %v1103, %v1098
      %v1108 = vextract.low.u32 %v1107
      %v1109 = vextract.high.u32 %v1107
      %v1110 = vmul.u32 %v1103, %v1094
      %v1111 = vadd.s32 %v1106, %v1108
      %vm1112 = vc.u32 %v1106, %v1108
      %v1113 = vadd.s32 %v1109, 1
      %v1114 = vsel %vm1112, %v1113, %v1109
      %v1115 = vadd.s32 %v1110, %v1114
      %v1116 = vadd.s32 %v1115, 536870912
      %v1117 = vshrl.u32 %v1116, 30
      %v1118 = vshll.u32 %v1117, 30
      %v1119 = vsub.s32 %v1115, %v1118
      %vm1120 = vcmp.lt.s32.totalorder %v1119, 0
      %v1121 = vsub.s32 0, %v1119
      %v1122 = vsel %vm1120, %v1121, %v1119
      %v1123 = vclz %v1122
      %v1124 = vsub.s32 %v1123, 2
      %vm1125 = vcmp.gt.s32.totalorder 0, %v1124
      %v1126 = vsel %vm1125, 0, %v1124
      %v1127 = vsub.s32 32, %v1126
      %v1128 = vshll.u32 %v1119, %v1126
      %v1129 = vshrl.u32 %v1111, %v1127
      %v1130 = vor.u32 %v1128, %v1129
      %v1131 = vsub.s32 4294967266, %v1126
      %v1132 = vadd.s32 %v1131, 127
      %v1133 = vshll.u32 %v1132, 23
      %v1134 = vor.u32 4788187, %v1133
      %v1135 = vand.u32 2147483647, %v1134
      %v1137 = vcvt.s32.f32 %v1130
      %v1138 = vmul.f32 %v1137, %v1135
      %v1139 = vxor.u32 %v1138, 2147483648
      %v1140 = vsel %vm1057, %v1139, %v1138
      %v1141 = vsub.s32 4, %v1117
      %v1142 = vsel %vm1057, %v1141, %v1117
      %v1143 = vsel %vm1056, %v223, %v1140
      %v1144 = vsel %vm1056, 0, %v1142
      %v1145 = vcosq.f32.pop %v1143
      %v1146 = vsinq.f32.pop %v1143
      %vm1147 = vweird.f32 %v223
      %v1148 = vand.u32 %v1144, 3
      %vm1149 = vcmp.lt.s32.totalorder %v1148, 2
      %vm1150 = vcmp.eq.s32.totalorder %v1148, 0
      %v1151 = vxor.u32 %v1146, 2147483648
      %v1152 = vsel %vm1150, %v1145, %v1151
      %vm1153 = vcmp.eq.s32.totalorder %v1148, 2
      %v1154 = vxor.u32 %v1145, 2147483648
      %v1155 = vsel %vm1153, %v1154, %v1146
      %v1156 = vsel %vm1149, %v1152, %v1155
      %v1157 = vsel %vm1147, nan, %v1156
      %v1158 = vand.u32 2147483647, %v224
      %vm1159 = vcmp.le.f32.partialorder %v1158, 0.7853982
      %vm1160 = vcmp.lt.s32.totalorder %v224, 0
      %v1161 = vand.u32 %v224, 2139095040
      %v1162 = vshrl.u32 %v1161, 23
      %v1163 = vsub.s32 %v1162, 127
      %v1164 = vand.u32 2147483647, %v224
      %v1165 = vand.u32 %v1164, 8388607
      %v1166 = vor.u32 %v1165, 8388608
      %v1167 = vsub.s32 0, %v1166
      %v1168 = vadd.s32 %v1163, 1
      %vm1169 = vcmp.gt.s32.totalorder %v1168, 0
      %v1170 = vsel %vm1169, %v1168, 0
      %v1171 = vshrl.u32 %v1170, 5
      %v1172 = vand.u32 %v1170, 31
      %v1173 = vsub.s32 32, %v1172
      %v1174 = vshrl.u32 683565275, %v1173
      %v1175 = vshll.u32 683565275, %v1172
      %v1176 = vshrl.u32 2475754826, %v1173
      %v1177 = vor.u32 %v1175, %v1176
      %v1178 = vshll.u32 2475754826, %v1172
      %v1179 = vshrl.u32 2131351028, %v1173
      %v1180 = vor.u32 %v1178, %v1179
      %v1181 = vshll.u32 2131351028, %v1172
      %v1182 = vshrl.u32 2102212464, %v1173
      %v1183 = vor.u32 %v1181, %v1182
      %v1184 = vshll.u32 2102212464, %v1172
      %v1185 = vshrl.u32 920167782, %v1173
      %v1186 = vor.u32 %v1184, %v1185
      %v1187 = vshll.u32 920167782, %v1172
      %v1188 = vshrl.u32 1326507024, %v1173
      %v1189 = vor.u32 %v1187, %v1188
      %vm1190 = vcmp.lt.s32.totalorder %v1171, 1
      %vm1191 = vcmp.lt.s32.totalorder %v1171, 2
      %vm1192 = vcmp.lt.s32.totalorder %v1171, 3
      %vm1193 = vcmp.lt.s32.totalorder %v1171, 4
      %v1194 = vsel %vm1190, %v1174, %v1177
      %v1195 = vsel %vm1193, %v1183, 2102212464
      %v1196 = vsel %vm1192, %v1180, %v1195
      %v1197 = vsel %vm1191, %v1194, %v1196
      %v1198 = vsel %vm1190, %v1177, %v1180
      %v1199 = vsel %vm1193, %v1186, 920167782
      %v1200 = vsel %vm1192, %v1183, %v1199
      %v1201 = vsel %vm1191, %v1198, %v1200
      %v1202 = vsel %vm1190, %v1180, %v1183
      %v1203 = vsel %vm1193, %v1189, 1326507024
      %v1204 = vsel %vm1192, %v1186, %v1203
      %v1205 = vsel %vm1191, %v1202, %v1204
      %v1206 = vshll.u32 %v1166, 8
      %v1207 = vmul.u32.u64.compose %v1206, %v1205
      %v1208 = vextract.low.u32 %v1207
      %v1209 = vextract.high.u32 %v1207
      %v1210 = vmul.u32.u64.compose %v1206, %v1201
      %v1211 = vextract.low.u32 %v1210
      %v1212 = vextract.high.u32 %v1210
      %v1213 = vmul.u32 %v1206, %v1197
      %v1214 = vadd.s32 %v1209, %v1211
      %vm1215 = vc.u32 %v1209, %v1211
      %v1216 = vadd.s32 %v1212, 1
      %v1217 = vsel %vm1215, %v1216, %v1212
      %v1218 = vadd.s32 %v1213, %v1217
      %v1219 = vadd.s32 %v1218, 536870912
      %v1220 = vshrl.u32 %v1219, 30
      %v1221 = vshll.u32 %v1220, 30
      %v1222 = vsub.s32 %v1218, %v1221
      %vm1223 = vcmp.lt.s32.totalorder %v1222, 0
      %v1224 = vsub.s32 0, %v1222
      %v1225 = vsel %vm1223, %v1224, %v1222
      %v1226 = vclz %v1225
      %v1227 = vsub.s32 %v1226, 2
      %vm1228 = vcmp.gt.s32.totalorder 0, %v1227
      %v1229 = vsel %vm1228, 0, %v1227
      %v1230 = vsub.s32 32, %v1229
      %v1231 = vshll.u32 %v1222, %v1229
      %v1232 = vshrl.u32 %v1214, %v1230
      %v1233 = vor.u32 %v1231, %v1232
      %v1234 = vsub.s32 4294967266, %v1229
      %v1235 = vadd.s32 %v1234, 127
      %v1236 = vshll.u32 %v1235, 23
      %v1237 = vor.u32 4788187, %v1236
      %v1238 = vand.u32 2147483647, %v1237
      %v1240 = vcvt.s32.f32 %v1233
      %v1241 = vmul.f32 %v1240, %v1238
      %v1242 = vxor.u32 %v1241, 2147483648
      %v1243 = vsel %vm1160, %v1242, %v1241
      %v1244 = vsub.s32 4, %v1220
      %v1245 = vsel %vm1160, %v1244, %v1220
      %v1246 = vsel %vm1159, %v224, %v1243
      %v1247 = vsel %vm1159, 0, %v1245
      %v1248 = vcosq.f32.pop %v1246
      %v1249 = vsinq.f32.pop %v1246
      %vm1250 = vweird.f32 %v224
      %v1251 = vand.u32 %v1247, 3
      %vm1252 = vcmp.lt.s32.totalorder %v1251, 2
      %vm1253 = vcmp.eq.s32.totalorder %v1251, 0
      %v1254 = vxor.u32 %v1249, 2147483648
      %v1255 = vsel %vm1253, %v1248, %v1254
      %vm1256 = vcmp.eq.s32.totalorder %v1251, 2
      %v1257 = vxor.u32 %v1248, 2147483648
      %v1258 = vsel %vm1256, %v1257, %v1249
      %v1259 = vsel %vm1252, %v1255, %v1258
      %v1260 = vsel %vm1250, nan, %v1259
      %v1261 = vand.u32 2147483647, %v225
      %vm1262 = vcmp.le.f32.partialorder %v1261, 0.7853982
      %vm1263 = vcmp.lt.s32.totalorder %v225, 0
      %v1264 = vand.u32 %v225, 2139095040
      %v1265 = vshrl.u32 %v1264, 23
      %v1266 = vsub.s32 %v1265, 127
      %v1267 = vand.u32 2147483647, %v225
      %v1268 = vand.u32 %v1267, 8388607
      %v1269 = vor.u32 %v1268, 8388608
      %v1270 = vsub.s32 0, %v1269
      %v1271 = vadd.s32 %v1266, 1
      %vm1272 = vcmp.gt.s32.totalorder %v1271, 0
      %v1273 = vsel %vm1272, %v1271, 0
      %v1274 = vshrl.u32 %v1273, 5
      %v1275 = vand.u32 %v1273, 31
      %v1276 = vsub.s32 32, %v1275
      %v1277 = vshrl.u32 683565275, %v1276
      %v1278 = vshll.u32 683565275, %v1275
      %v1279 = vshrl.u32 2475754826, %v1276
      %v1280 = vor.u32 %v1278, %v1279
      %v1281 = vshll.u32 2475754826, %v1275
      %v1282 = vshrl.u32 2131351028, %v1276
      %v1283 = vor.u32 %v1281, %v1282
      %v1284 = vshll.u32 2131351028, %v1275
      %v1285 = vshrl.u32 2102212464, %v1276
      %v1286 = vor.u32 %v1284, %v1285
      %v1287 = vshll.u32 2102212464, %v1275
      %v1288 = vshrl.u32 920167782, %v1276
      %v1289 = vor.u32 %v1287, %v1288
      %v1290 = vshll.u32 920167782, %v1275
      %v1291 = vshrl.u32 1326507024, %v1276
      %v1292 = vor.u32 %v1290, %v1291
      %vm1293 = vcmp.lt.s32.totalorder %v1274, 1
      %vm1294 = vcmp.lt.s32.totalorder %v1274, 2
      %vm1295 = vcmp.lt.s32.totalorder %v1274, 3
      %vm1296 = vcmp.lt.s32.totalorder %v1274, 4
      %v1297 = vsel %vm1293, %v1277, %v1280
      %v1298 = vsel %vm1296, %v1286, 2102212464
      %v1299 = vsel %vm1295, %v1283, %v1298
      %v1300 = vsel %vm1294, %v1297, %v1299
      %v1301 = vsel %vm1293, %v1280, %v1283
      %v1302 = vsel %vm1296, %v1289, 920167782
      %v1303 = vsel %vm1295, %v1286, %v1302
      %v1304 = vsel %vm1294, %v1301, %v1303
      %v1305 = vsel %vm1293, %v1283, %v1286
      %v1306 = vsel %vm1296, %v1292, 1326507024
      %v1307 = vsel %vm1295, %v1289, %v1306
      %v1308 = vsel %vm1294, %v1305, %v1307
      %v1309 = vshll.u32 %v1269, 8
      %v1310 = vmul.u32.u64.compose %v1309, %v1308
      %v1311 = vextract.low.u32 %v1310
      %v1312 = vextract.high.u32 %v1310
      %v1313 = vmul.u32.u64.compose %v1309, %v1304
      %v1314 = vextract.low.u32 %v1313
      %v1315 = vextract.high.u32 %v1313
      %v1316 = vmul.u32 %v1309, %v1300
      %v1317 = vadd.s32 %v1312, %v1314
      %vm1318 = vc.u32 %v1312, %v1314
      %v1319 = vadd.s32 %v1315, 1
      %v1320 = vsel %vm1318, %v1319, %v1315
      %v1321 = vadd.s32 %v1316, %v1320
      %v1322 = vadd.s32 %v1321, 536870912
      %v1323 = vshrl.u32 %v1322, 30
      %v1324 = vshll.u32 %v1323, 30
      %v1325 = vsub.s32 %v1321, %v1324
      %vm1326 = vcmp.lt.s32.totalorder %v1325, 0
      %v1327 = vsub.s32 0, %v1325
      %v1328 = vsel %vm1326, %v1327, %v1325
      %v1329 = vclz %v1328
      %v1330 = vsub.s32 %v1329, 2
      %vm1331 = vcmp.gt.s32.totalorder 0, %v1330
      %v1332 = vsel %vm1331, 0, %v1330
      %v1333 = vsub.s32 32, %v1332
      %v1334 = vshll.u32 %v1325, %v1332
      %v1335 = vshrl.u32 %v1317, %v1333
      %v1336 = vor.u32 %v1334, %v1335
      %v1337 = vsub.s32 4294967266, %v1332
      %v1338 = vadd.s32 %v1337, 127
      %v1339 = vshll.u32 %v1338, 23
      %v1340 = vor.u32 4788187, %v1339
      %v1341 = vand.u32 2147483647, %v1340
      %v1343 = vcvt.s32.f32 %v1336
      %v1344 = vmul.f32 %v1343, %v1341
      %v1345 = vxor.u32 %v1344, 2147483648
      %v1346 = vsel %vm1263, %v1345, %v1344
      %v1347 = vsub.s32 4, %v1323
      %v1348 = vsel %vm1263, %v1347, %v1323
      %v1349 = vsel %vm1262, %v225, %v1346
      %v1350 = vsel %vm1262, 0, %v1348
      %v1351 = vcosq.f32.pop %v1349
      %v1352 = vsinq.f32.pop %v1349
      %vm1353 = vweird.f32 %v225
      %v1354 = vand.u32 %v1350, 3
      %vm1355 = vcmp.lt.s32.totalorder %v1354, 2
      %vm1356 = vcmp.eq.s32.totalorder %v1354, 0
      %v1357 = vxor.u32 %v1352, 2147483648
      %v1358 = vsel %vm1356, %v1351, %v1357
      %vm1359 = vcmp.eq.s32.totalorder %v1354, 2
      %v1360 = vxor.u32 %v1351, 2147483648
      %v1361 = vsel %vm1359, %v1360, %v1352
      %v1362 = vsel %vm1355, %v1358, %v1361
      %v1363 = vsel %vm1353, nan, %v1362
      %v1364 = vand.u32 2147483647, %v226
      %vm1365 = vcmp.le.f32.partialorder %v1364, 0.7853982
      %vm1366 = vcmp.lt.s32.totalorder %v226, 0
      %v1367 = vand.u32 %v226, 2139095040
      %v1368 = vshrl.u32 %v1367, 23
      %v1369 = vsub.s32 %v1368, 127
      %v1370 = vand.u32 2147483647, %v226
      %v1371 = vand.u32 %v1370, 8388607
      %v1372 = vor.u32 %v1371, 8388608
      %v1373 = vsub.s32 0, %v1372
      %v1374 = vadd.s32 %v1369, 1
      %vm1375 = vcmp.gt.s32.totalorder %v1374, 0
      %v1376 = vsel %vm1375, %v1374, 0
      %v1377 = vshrl.u32 %v1376, 5
      %v1378 = vand.u32 %v1376, 31
      %v1379 = vsub.s32 32, %v1378
      %v1380 = vshrl.u32 683565275, %v1379
      %v1381 = vshll.u32 683565275, %v1378
      %v1382 = vshrl.u32 2475754826, %v1379
      %v1383 = vor.u32 %v1381, %v1382
      %v1384 = vshll.u32 2475754826, %v1378
      %v1385 = vshrl.u32 2131351028, %v1379
      %v1386 = vor.u32 %v1384, %v1385
      %v1387 = vshll.u32 2131351028, %v1378
      %v1388 = vshrl.u32 2102212464, %v1379
      %v1389 = vor.u32 %v1387, %v1388
      %v1390 = vshll.u32 2102212464, %v1378
      %v1391 = vshrl.u32 920167782, %v1379
      %v1392 = vor.u32 %v1390, %v1391
      %v1393 = vshll.u32 920167782, %v1378
      %v1394 = vshrl.u32 1326507024, %v1379
      %v1395 = vor.u32 %v1393, %v1394
      %vm1396 = vcmp.lt.s32.totalorder %v1377, 1
      %vm1397 = vcmp.lt.s32.totalorder %v1377, 2
      %vm1398 = vcmp.lt.s32.totalorder %v1377, 3
      %vm1399 = vcmp.lt.s32.totalorder %v1377, 4
      %v1400 = vsel %vm1396, %v1380, %v1383
      %v1401 = vsel %vm1399, %v1389, 2102212464
      %v1402 = vsel %vm1398, %v1386, %v1401
      %v1403 = vsel %vm1397, %v1400, %v1402
      %v1404 = vsel %vm1396, %v1383, %v1386
      %v1405 = vsel %vm1399, %v1392, 920167782
      %v1406 = vsel %vm1398, %v1389, %v1405
      %v1407 = vsel %vm1397, %v1404, %v1406
      %v1408 = vsel %vm1396, %v1386, %v1389
      %v1409 = vsel %vm1399, %v1395, 1326507024
      %v1410 = vsel %vm1398, %v1392, %v1409
      %v1411 = vsel %vm1397, %v1408, %v1410
      %v1412 = vshll.u32 %v1372, 8
      %v1413 = vmul.u32.u64.compose %v1412, %v1411
      %v1414 = vextract.low.u32 %v1413
      %v1415 = vextract.high.u32 %v1413
      %v1416 = vmul.u32.u64.compose %v1412, %v1407
      %v1417 = vextract.low.u32 %v1416
      %v1418 = vextract.high.u32 %v1416
      %v1419 = vmul.u32 %v1412, %v1403
      %v1420 = vadd.s32 %v1415, %v1417
      %vm1421 = vc.u32 %v1415, %v1417
      %v1422 = vadd.s32 %v1418, 1
      %v1423 = vsel %vm1421, %v1422, %v1418
      %v1424 = vadd.s32 %v1419, %v1423
      %v1425 = vadd.s32 %v1424, 536870912
      %v1426 = vshrl.u32 %v1425, 30
      %v1427 = vshll.u32 %v1426, 30
      %v1428 = vsub.s32 %v1424, %v1427
      %vm1429 = vcmp.lt.s32.totalorder %v1428, 0
      %v1430 = vsub.s32 0, %v1428
      %v1431 = vsel %vm1429, %v1430, %v1428
      %v1432 = vclz %v1431
      %v1433 = vsub.s32 %v1432, 2
      %vm1434 = vcmp.gt.s32.totalorder 0, %v1433
      %v1435 = vsel %vm1434, 0, %v1433
      %v1436 = vsub.s32 32, %v1435
      %v1437 = vshll.u32 %v1428, %v1435
      %v1438 = vshrl.u32 %v1420, %v1436
      %v1439 = vor.u32 %v1437, %v1438
      %v1440 = vsub.s32 4294967266, %v1435
      %v1441 = vadd.s32 %v1440, 127
      %v1442 = vshll.u32 %v1441, 23
      %v1443 = vor.u32 4788187, %v1442
      %v1444 = vand.u32 2147483647, %v1443
      %v1446 = vcvt.s32.f32 %v1439
      %v1447 = vmul.f32 %v1446, %v1444
      %v1448 = vxor.u32 %v1447, 2147483648
      %v1449 = vsel %vm1366, %v1448, %v1447
      %v1450 = vsub.s32 4, %v1426
      %v1451 = vsel %vm1366, %v1450, %v1426
      %v1452 = vsel %vm1365, %v226, %v1449
      %v1453 = vsel %vm1365, 0, %v1451
      %v1454 = vcosq.f32.pop %v1452
      %v1455 = vsinq.f32.pop %v1452
      %vm1456 = vweird.f32 %v226
      %v1457 = vand.u32 %v1453, 3
      %vm1458 = vcmp.lt.s32.totalorder %v1457, 2
      %vm1459 = vcmp.eq.s32.totalorder %v1457, 0
      %v1460 = vxor.u32 %v1455, 2147483648
      %v1461 = vsel %vm1459, %v1454, %v1460
      %vm1462 = vcmp.eq.s32.totalorder %v1457, 2
      %v1463 = vxor.u32 %v1454, 2147483648
      %v1464 = vsel %vm1462, %v1463, %v1455
      %v1465 = vsel %vm1458, %v1461, %v1464
      %v1466 = vsel %vm1456, nan, %v1465
      %v1467 = vand.u32 2147483647, %v227
      %vm1468 = vcmp.le.f32.partialorder %v1467, 0.7853982
      %vm1469 = vcmp.lt.s32.totalorder %v227, 0
      %v1470 = vand.u32 %v227, 2139095040
      %v1471 = vshrl.u32 %v1470, 23
      %v1472 = vsub.s32 %v1471, 127
      %v1473 = vand.u32 2147483647, %v227
      %v1474 = vand.u32 %v1473, 8388607
      %v1475 = vor.u32 %v1474, 8388608
      %v1476 = vsub.s32 0, %v1475
      %v1477 = vadd.s32 %v1472, 1
      %vm1478 = vcmp.gt.s32.totalorder %v1477, 0
      %v1479 = vsel %vm1478, %v1477, 0
      %v1480 = vshrl.u32 %v1479, 5
      %v1481 = vand.u32 %v1479, 31
      %v1482 = vsub.s32 32, %v1481
      %v1483 = vshrl.u32 683565275, %v1482
      %v1484 = vshll.u32 683565275, %v1481
      %v1485 = vshrl.u32 2475754826, %v1482
      %v1486 = vor.u32 %v1484, %v1485
      %v1487 = vshll.u32 2475754826, %v1481
      %v1488 = vshrl.u32 2131351028, %v1482
      %v1489 = vor.u32 %v1487, %v1488
      %v1490 = vshll.u32 2131351028, %v1481
      %v1491 = vshrl.u32 2102212464, %v1482
      %v1492 = vor.u32 %v1490, %v1491
      %v1493 = vshll.u32 2102212464, %v1481
      %v1494 = vshrl.u32 920167782, %v1482
      %v1495 = vor.u32 %v1493, %v1494
      %v1496 = vshll.u32 920167782, %v1481
      %v1497 = vshrl.u32 1326507024, %v1482
      %v1498 = vor.u32 %v1496, %v1497
      %vm1499 = vcmp.lt.s32.totalorder %v1480, 1
      %vm1500 = vcmp.lt.s32.totalorder %v1480, 2
      %vm1501 = vcmp.lt.s32.totalorder %v1480, 3
      %vm1502 = vcmp.lt.s32.totalorder %v1480, 4
      %v1503 = vsel %vm1499, %v1483, %v1486
      %v1504 = vsel %vm1502, %v1492, 2102212464
      %v1505 = vsel %vm1501, %v1489, %v1504
      %v1506 = vsel %vm1500, %v1503, %v1505
      %v1507 = vsel %vm1499, %v1486, %v1489
      %v1508 = vsel %vm1502, %v1495, 920167782
      %v1509 = vsel %vm1501, %v1492, %v1508
      %v1510 = vsel %vm1500, %v1507, %v1509
      %v1511 = vsel %vm1499, %v1489, %v1492
      %v1512 = vsel %vm1502, %v1498, 1326507024
      %v1513 = vsel %vm1501, %v1495, %v1512
      %v1514 = vsel %vm1500, %v1511, %v1513
      %v1515 = vshll.u32 %v1475, 8
      %v1516 = vmul.u32.u64.compose %v1515, %v1514
      %v1517 = vextract.low.u32 %v1516
      %v1518 = vextract.high.u32 %v1516
      %v1519 = vmul.u32.u64.compose %v1515, %v1510
      %v1520 = vextract.low.u32 %v1519
      %v1521 = vextract.high.u32 %v1519
      %v1522 = vmul.u32 %v1515, %v1506
      %v1523 = vadd.s32 %v1518, %v1520
      %vm1524 = vc.u32 %v1518, %v1520
      %v1525 = vadd.s32 %v1521, 1
      %v1526 = vsel %vm1524, %v1525, %v1521
      %v1527 = vadd.s32 %v1522, %v1526
      %v1528 = vadd.s32 %v1527, 536870912
      %v1529 = vshrl.u32 %v1528, 30
      %v1530 = vshll.u32 %v1529, 30
      %v1531 = vsub.s32 %v1527, %v1530
      %vm1532 = vcmp.lt.s32.totalorder %v1531, 0
      %v1533 = vsub.s32 0, %v1531
      %v1534 = vsel %vm1532, %v1533, %v1531
      %v1535 = vclz %v1534
      %v1536 = vsub.s32 %v1535, 2
      %vm1537 = vcmp.gt.s32.totalorder 0, %v1536
      %v1538 = vsel %vm1537, 0, %v1536
      %v1539 = vsub.s32 32, %v1538
      %v1540 = vshll.u32 %v1531, %v1538
      %v1541 = vshrl.u32 %v1523, %v1539
      %v1542 = vor.u32 %v1540, %v1541
      %v1543 = vsub.s32 4294967266, %v1538
      %v1544 = vadd.s32 %v1543, 127
      %v1545 = vshll.u32 %v1544, 23
      %v1546 = vor.u32 4788187, %v1545
      %v1547 = vand.u32 2147483647, %v1546
      %v1549 = vcvt.s32.f32 %v1542
      %v1550 = vmul.f32 %v1549, %v1547
      %v1551 = vxor.u32 %v1550, 2147483648
      %v1552 = vsel %vm1469, %v1551, %v1550
      %v1553 = vsub.s32 4, %v1529
      %v1554 = vsel %vm1469, %v1553, %v1529
      %v1555 = vsel %vm1468, %v227, %v1552
      %v1556 = vsel %vm1468, 0, %v1554
      %v1557 = vcosq.f32.pop %v1555
      %v1558 = vsinq.f32.pop %v1555
      %vm1559 = vweird.f32 %v227
      %v1560 = vand.u32 %v1556, 3
      %vm1561 = vcmp.lt.s32.totalorder %v1560, 2
      %vm1562 = vcmp.eq.s32.totalorder %v1560, 0
      %v1563 = vxor.u32 %v1558, 2147483648
      %v1564 = vsel %vm1562, %v1557, %v1563
      %vm1565 = vcmp.eq.s32.totalorder %v1560, 2
      %v1566 = vxor.u32 %v1557, 2147483648
      %v1567 = vsel %vm1565, %v1566, %v1558
      %v1568 = vsel %vm1561, %v1564, %v1567
      %v1569 = vsel %vm1559, nan, %v1568
      %v1570 = vand.u32 2147483647, %v228
      %vm1571 = vcmp.le.f32.partialorder %v1570, 0.7853982
      %vm1572 = vcmp.lt.s32.totalorder %v228, 0
      %v1573 = vand.u32 %v228, 2139095040
      %v1574 = vshrl.u32 %v1573, 23
      %v1575 = vsub.s32 %v1574, 127
      %v1576 = vand.u32 2147483647, %v228
      %v1577 = vand.u32 %v1576, 8388607
      %v1578 = vor.u32 %v1577, 8388608
      %v1579 = vsub.s32 0, %v1578
      %v1580 = vadd.s32 %v1575, 1
      %vm1581 = vcmp.gt.s32.totalorder %v1580, 0
      %v1582 = vsel %vm1581, %v1580, 0
      %v1583 = vshrl.u32 %v1582, 5
      %v1584 = vand.u32 %v1582, 31
      %v1585 = vsub.s32 32, %v1584
      %v1586 = vshrl.u32 683565275, %v1585
      %v1587 = vshll.u32 683565275, %v1584
      %v1588 = vshrl.u32 2475754826, %v1585
      %v1589 = vor.u32 %v1587, %v1588
      %v1590 = vshll.u32 2475754826, %v1584
      %v1591 = vshrl.u32 2131351028, %v1585
      %v1592 = vor.u32 %v1590, %v1591
      %v1593 = vshll.u32 2131351028, %v1584
      %v1594 = vshrl.u32 2102212464, %v1585
      %v1595 = vor.u32 %v1593, %v1594
      %v1596 = vshll.u32 2102212464, %v1584
      %v1597 = vshrl.u32 920167782, %v1585
      %v1598 = vor.u32 %v1596, %v1597
      %v1599 = vshll.u32 920167782, %v1584
      %v1600 = vshrl.u32 1326507024, %v1585
      %v1601 = vor.u32 %v1599, %v1600
      %vm1602 = vcmp.lt.s32.totalorder %v1583, 1
      %vm1603 = vcmp.lt.s32.totalorder %v1583, 2
      %vm1604 = vcmp.lt.s32.totalorder %v1583, 3
      %vm1605 = vcmp.lt.s32.totalorder %v1583, 4
      %v1606 = vsel %vm1602, %v1586, %v1589
      %v1607 = vsel %vm1605, %v1595, 2102212464
      %v1608 = vsel %vm1604, %v1592, %v1607
      %v1609 = vsel %vm1603, %v1606, %v1608
      %v1610 = vsel %vm1602, %v1589, %v1592
      %v1611 = vsel %vm1605, %v1598, 920167782
      %v1612 = vsel %vm1604, %v1595, %v1611
      %v1613 = vsel %vm1603, %v1610, %v1612
      %v1614 = vsel %vm1602, %v1592, %v1595
      %v1615 = vsel %vm1605, %v1601, 1326507024
      %v1616 = vsel %vm1604, %v1598, %v1615
      %v1617 = vsel %vm1603, %v1614, %v1616
      %v1618 = vshll.u32 %v1578, 8
      %v1619 = vmul.u32.u64.compose %v1618, %v1617
      %v1620 = vextract.low.u32 %v1619
      %v1621 = vextract.high.u32 %v1619
      %v1622 = vmul.u32.u64.compose %v1618, %v1613
      %v1623 = vextract.low.u32 %v1622
      %v1624 = vextract.high.u32 %v1622
      %v1625 = vmul.u32 %v1618, %v1609
      %v1626 = vadd.s32 %v1621, %v1623
      %vm1627 = vc.u32 %v1621, %v1623
      %v1628 = vadd.s32 %v1624, 1
      %v1629 = vsel %vm1627, %v1628, %v1624
      %v1630 = vadd.s32 %v1625, %v1629
      %v1631 = vadd.s32 %v1630, 536870912
      %v1632 = vshrl.u32 %v1631, 30
      %v1633 = vshll.u32 %v1632, 30
      %v1634 = vsub.s32 %v1630, %v1633
      %vm1635 = vcmp.lt.s32.totalorder %v1634, 0
      %v1636 = vsub.s32 0, %v1634
      %v1637 = vsel %vm1635, %v1636, %v1634
      %v1638 = vclz %v1637
      %v1639 = vsub.s32 %v1638, 2
      %vm1640 = vcmp.gt.s32.totalorder 0, %v1639
      %v1641 = vsel %vm1640, 0, %v1639
      %v1642 = vsub.s32 32, %v1641
      %v1643 = vshll.u32 %v1634, %v1641
      %v1644 = vshrl.u32 %v1626, %v1642
      %v1645 = vor.u32 %v1643, %v1644
      %v1646 = vsub.s32 4294967266, %v1641
      %v1647 = vadd.s32 %v1646, 127
      %v1648 = vshll.u32 %v1647, 23
      %v1649 = vor.u32 4788187, %v1648
      %v1650 = vand.u32 2147483647, %v1649
      %v1652 = vcvt.s32.f32 %v1645
      %v1653 = vmul.f32 %v1652, %v1650
      %v1654 = vxor.u32 %v1653, 2147483648
      %v1655 = vsel %vm1572, %v1654, %v1653
      %v1656 = vsub.s32 4, %v1632
      %v1657 = vsel %vm1572, %v1656, %v1632
      %v1658 = vsel %vm1571, %v228, %v1655
      %v1659 = vsel %vm1571, 0, %v1657
      %v1660 = vcosq.f32.pop %v1658
      %v1661 = vsinq.f32.pop %v1658
      %vm1662 = vweird.f32 %v228
      %v1663 = vand.u32 %v1659, 3
      %vm1664 = vcmp.lt.s32.totalorder %v1663, 2
      %vm1665 = vcmp.eq.s32.totalorder %v1663, 0
      %v1666 = vxor.u32 %v1661, 2147483648
      %v1667 = vsel %vm1665, %v1660, %v1666
      %vm1668 = vcmp.eq.s32.totalorder %v1663, 2
      %v1669 = vxor.u32 %v1660, 2147483648
      %v1670 = vsel %vm1668, %v1669, %v1661
      %v1671 = vsel %vm1664, %v1667, %v1670
      %v1672 = vsel %vm1662, nan, %v1671
      %v1673 = vand.u32 2147483647, %v229
      %vm1674 = vcmp.le.f32.partialorder %v1673, 0.7853982
      %vm1675 = vcmp.lt.s32.totalorder %v229, 0
      %v1676 = vand.u32 %v229, 2139095040
      %v1677 = vshrl.u32 %v1676, 23
      %v1678 = vsub.s32 %v1677, 127
      %v1679 = vand.u32 2147483647, %v229
      %v1680 = vand.u32 %v1679, 8388607
      %v1681 = vor.u32 %v1680, 8388608
      %v1682 = vsub.s32 0, %v1681
      %v1683 = vadd.s32 %v1678, 1
      %vm1684 = vcmp.gt.s32.totalorder %v1683, 0
      %v1685 = vsel %vm1684, %v1683, 0
      %v1686 = vshrl.u32 %v1685, 5
      %v1687 = vand.u32 %v1685, 31
      %v1688 = vsub.s32 32, %v1687
      %v1689 = vshrl.u32 683565275, %v1688
      %v1690 = vshll.u32 683565275, %v1687
      %v1691 = vshrl.u32 2475754826, %v1688
      %v1692 = vor.u32 %v1690, %v1691
      %v1693 = vshll.u32 2475754826, %v1687
      %v1694 = vshrl.u32 2131351028, %v1688
      %v1695 = vor.u32 %v1693, %v1694
      %v1696 = vshll.u32 2131351028, %v1687
      %v1697 = vshrl.u32 2102212464, %v1688
      %v1698 = vor.u32 %v1696, %v1697
      %v1699 = vshll.u32 2102212464, %v1687
      %v1700 = vshrl.u32 920167782, %v1688
      %v1701 = vor.u32 %v1699, %v1700
      %v1702 = vshll.u32 920167782, %v1687
      %v1703 = vshrl.u32 1326507024, %v1688
      %v1704 = vor.u32 %v1702, %v1703
      %vm1705 = vcmp.lt.s32.totalorder %v1686, 1
      %vm1706 = vcmp.lt.s32.totalorder %v1686, 2
      %vm1707 = vcmp.lt.s32.totalorder %v1686, 3
      %vm1708 = vcmp.lt.s32.totalorder %v1686, 4
      %v1709 = vsel %vm1705, %v1689, %v1692
      %v1710 = vsel %vm1708, %v1698, 2102212464
      %v1711 = vsel %vm1707, %v1695, %v1710
      %v1712 = vsel %vm1706, %v1709, %v1711
      %v1713 = vsel %vm1705, %v1692, %v1695
      %v1714 = vsel %vm1708, %v1701, 920167782
      %v1715 = vsel %vm1707, %v1698, %v1714
      %v1716 = vsel %vm1706, %v1713, %v1715
      %v1717 = vsel %vm1705, %v1695, %v1698
      %v1718 = vsel %vm1708, %v1704, 1326507024
      %v1719 = vsel %vm1707, %v1701, %v1718
      %v1720 = vsel %vm1706, %v1717, %v1719
      %v1721 = vshll.u32 %v1681, 8
      %v1722 = vmul.u32.u64.compose %v1721, %v1720
      %v1723 = vextract.low.u32 %v1722
      %v1724 = vextract.high.u32 %v1722
      %v1725 = vmul.u32.u64.compose %v1721, %v1716
      %v1726 = vextract.low.u32 %v1725
      %v1727 = vextract.high.u32 %v1725
      %v1728 = vmul.u32 %v1721, %v1712
      %v1729 = vadd.s32 %v1724, %v1726
      %vm1730 = vc.u32 %v1724, %v1726
      %v1731 = vadd.s32 %v1727, 1
      %v1732 = vsel %vm1730, %v1731, %v1727
      %v1733 = vadd.s32 %v1728, %v1732
      %v1734 = vadd.s32 %v1733, 536870912
      %v1735 = vshrl.u32 %v1734, 30
      %v1736 = vshll.u32 %v1735, 30
      %v1737 = vsub.s32 %v1733, %v1736
      %vm1738 = vcmp.lt.s32.totalorder %v1737, 0
      %v1739 = vsub.s32 0, %v1737
      %v1740 = vsel %vm1738, %v1739, %v1737
      %v1741 = vclz %v1740
      %v1742 = vsub.s32 %v1741, 2
      %vm1743 = vcmp.gt.s32.totalorder 0, %v1742
      %v1744 = vsel %vm1743, 0, %v1742
      %v1745 = vsub.s32 32, %v1744
      %v1746 = vshll.u32 %v1737, %v1744
      %v1747 = vshrl.u32 %v1729, %v1745
      %v1748 = vor.u32 %v1746, %v1747
      %v1749 = vsub.s32 4294967266, %v1744
      %v1750 = vadd.s32 %v1749, 127
      %v1751 = vshll.u32 %v1750, 23
      %v1752 = vor.u32 4788187, %v1751
      %v1753 = vand.u32 2147483647, %v1752
      %v1755 = vcvt.s32.f32 %v1748
      %v1756 = vmul.f32 %v1755, %v1753
      %v1757 = vxor.u32 %v1756, 2147483648
      %v1758 = vsel %vm1675, %v1757, %v1756
      %v1759 = vsub.s32 4, %v1735
      %v1760 = vsel %vm1675, %v1759, %v1735
      %v1761 = vsel %vm1674, %v229, %v1758
      %v1762 = vsel %vm1674, 0, %v1760
      %v1763 = vcosq.f32.pop %v1761
      %v1764 = vsinq.f32.pop %v1761
      %vm1765 = vweird.f32 %v229
      %v1766 = vand.u32 %v1762, 3
      %vm1767 = vcmp.lt.s32.totalorder %v1766, 2
      %vm1768 = vcmp.eq.s32.totalorder %v1766, 0
      %v1769 = vxor.u32 %v1764, 2147483648
      %v1770 = vsel %vm1768, %v1763, %v1769
      %vm1771 = vcmp.eq.s32.totalorder %v1766, 2
      %v1772 = vxor.u32 %v1763, 2147483648
      %v1773 = vsel %vm1771, %v1772, %v1764
      %v1774 = vsel %vm1767, %v1770, %v1773
      %v1775 = vsel %vm1765, nan, %v1774
      %v1776 = vand.u32 2147483647, %v230
      %vm1777 = vcmp.le.f32.partialorder %v1776, 0.7853982
      %vm1778 = vcmp.lt.s32.totalorder %v230, 0
      %v1779 = vand.u32 %v230, 2139095040
      %v1780 = vshrl.u32 %v1779, 23
      %v1781 = vsub.s32 %v1780, 127
      %v1782 = vand.u32 2147483647, %v230
      %v1783 = vand.u32 %v1782, 8388607
      %v1784 = vor.u32 %v1783, 8388608
      %v1785 = vsub.s32 0, %v1784
      %v1786 = vadd.s32 %v1781, 1
      %vm1787 = vcmp.gt.s32.totalorder %v1786, 0
      %v1788 = vsel %vm1787, %v1786, 0
      %v1789 = vshrl.u32 %v1788, 5
      %v1790 = vand.u32 %v1788, 31
      %v1791 = vsub.s32 32, %v1790
      %v1792 = vshrl.u32 683565275, %v1791
      %v1793 = vshll.u32 683565275, %v1790
      %v1794 = vshrl.u32 2475754826, %v1791
      %v1795 = vor.u32 %v1793, %v1794
      %v1796 = vshll.u32 2475754826, %v1790
      %v1797 = vshrl.u32 2131351028, %v1791
      %v1798 = vor.u32 %v1796, %v1797
      %v1799 = vshll.u32 2131351028, %v1790
      %v1800 = vshrl.u32 2102212464, %v1791
      %v1801 = vor.u32 %v1799, %v1800
      %v1802 = vshll.u32 2102212464, %v1790
      %v1803 = vshrl.u32 920167782, %v1791
      %v1804 = vor.u32 %v1802, %v1803
      %v1805 = vshll.u32 920167782, %v1790
      %v1806 = vshrl.u32 1326507024, %v1791
      %v1807 = vor.u32 %v1805, %v1806
      %vm1808 = vcmp.lt.s32.totalorder %v1789, 1
      %vm1809 = vcmp.lt.s32.totalorder %v1789, 2
      %vm1810 = vcmp.lt.s32.totalorder %v1789, 3
      %vm1811 = vcmp.lt.s32.totalorder %v1789, 4
      %v1812 = vsel %vm1808, %v1792, %v1795
      %v1813 = vsel %vm1811, %v1801, 2102212464
      %v1814 = vsel %vm1810, %v1798, %v1813
      %v1815 = vsel %vm1809, %v1812, %v1814
      %v1816 = vsel %vm1808, %v1795, %v1798
      %v1817 = vsel %vm1811, %v1804, 920167782
      %v1818 = vsel %vm1810, %v1801, %v1817
      %v1819 = vsel %vm1809, %v1816, %v1818
      %v1820 = vsel %vm1808, %v1798, %v1801
      %v1821 = vsel %vm1811, %v1807, 1326507024
      %v1822 = vsel %vm1810, %v1804, %v1821
      %v1823 = vsel %vm1809, %v1820, %v1822
      %v1824 = vshll.u32 %v1784, 8
      %v1825 = vmul.u32.u64.compose %v1824, %v1823
      %v1826 = vextract.low.u32 %v1825
      %v1827 = vextract.high.u32 %v1825
      %v1828 = vmul.u32.u64.compose %v1824, %v1819
      %v1829 = vextract.low.u32 %v1828
      %v1830 = vextract.high.u32 %v1828
      %v1831 = vmul.u32 %v1824, %v1815
      %v1832 = vadd.s32 %v1827, %v1829
      %vm1833 = vc.u32 %v1827, %v1829
      %v1834 = vadd.s32 %v1830, 1
      %v1835 = vsel %vm1833, %v1834, %v1830
      %v1836 = vadd.s32 %v1831, %v1835
      %v1837 = vadd.s32 %v1836, 536870912
      %v1838 = vshrl.u32 %v1837, 30
      %v1839 = vshll.u32 %v1838, 30
      %v1840 = vsub.s32 %v1836, %v1839
      %vm1841 = vcmp.lt.s32.totalorder %v1840, 0
      %v1842 = vsub.s32 0, %v1840
      %v1843 = vsel %vm1841, %v1842, %v1840
      %v1844 = vclz %v1843
      %v1845 = vsub.s32 %v1844, 2
      %vm1846 = vcmp.gt.s32.totalorder 0, %v1845
      %v1847 = vsel %vm1846, 0, %v1845
      %v1848 = vsub.s32 32, %v1847
      %v1849 = vshll.u32 %v1840, %v1847
      %v1850 = vshrl.u32 %v1832, %v1848
      %v1851 = vor.u32 %v1849, %v1850
      %v1852 = vsub.s32 4294967266, %v1847
      %v1853 = vadd.s32 %v1852, 127
      %v1854 = vshll.u32 %v1853, 23
      %v1855 = vor.u32 4788187, %v1854
      %v1856 = vand.u32 2147483647, %v1855
      %v1858 = vcvt.s32.f32 %v1851
      %v1859 = vmul.f32 %v1858, %v1856
      %v1860 = vxor.u32 %v1859, 2147483648
      %v1861 = vsel %vm1778, %v1860, %v1859
      %v1862 = vsub.s32 4, %v1838
      %v1863 = vsel %vm1778, %v1862, %v1838
      %v1864 = vsel %vm1777, %v230, %v1861
      %v1865 = vsel %vm1777, 0, %v1863
      %v1866 = vcosq.f32.pop %v1864
      %v1867 = vsinq.f32.pop %v1864
      %vm1868 = vweird.f32 %v230
      %v1869 = vand.u32 %v1865, 3
      %vm1870 = vcmp.lt.s32.totalorder %v1869, 2
      %vm1871 = vcmp.eq.s32.totalorder %v1869, 0
      %v1872 = vxor.u32 %v1867, 2147483648
      %v1873 = vsel %vm1871, %v1866, %v1872
      %vm1874 = vcmp.eq.s32.totalorder %v1869, 2
      %v1875 = vxor.u32 %v1866, 2147483648
      %v1876 = vsel %vm1874, %v1875, %v1867
      %v1877 = vsel %vm1870, %v1873, %v1876
      %v1878 = vsel %vm1868, nan, %v1877
      %v1879 = vadd.f32 %v333, 1.0
      %v1880 = vadd.f32 %v436, 1.0
      %v1881 = vadd.f32 %v539, 1.0
      %v1882 = vadd.f32 %v642, 1.0
      %v1883 = vadd.f32 %v745, 1.0
      %v1884 = vadd.f32 %v848, 1.0
      %v1885 = vadd.f32 %v951, 1.0
      %v1886 = vadd.f32 %v1054, 1.0
      %v1887 = vadd.f32 %v1157, 1.0
      %v1888 = vadd.f32 %v1260, 1.0
      %v1889 = vadd.f32 %v1363, 1.0
      %v1890 = vadd.f32 %v1466, 1.0
      %v1891 = vadd.f32 %v1569, 1.0
      %v1892 = vadd.f32 %v1672, 1.0
      %v1893 = vadd.f32 %v1775, 1.0
      %v1894 = vadd.f32 %v1878, 1.0
      %v1895 = vmul.f32 %v1879, 0.5
      %v1896 = vmul.f32 %v1880, 0.5
      %v1897 = vmul.f32 %v1881, 0.5
      %v1898 = vmul.f32 %v1882, 0.5
      %v1899 = vmul.f32 %v1883, 0.5
      %v1900 = vmul.f32 %v1884, 0.5
      %v1901 = vmul.f32 %v1885, 0.5
      %v1902 = vmul.f32 %v1886, 0.5
      %v1903 = vmul.f32 %v1887, 0.5
      %v1904 = vmul.f32 %v1888, 0.5
      %v1905 = vmul.f32 %v1889, 0.5
      %v1906 = vmul.f32 %v1890, 0.5
      %v1907 = vmul.f32 %v1891, 0.5
      %v1908 = vmul.f32 %v1892, 0.5
      %v1909 = vmul.f32 %v1893, 0.5
      %v1910 = vmul.f32 %v1894, 0.5
      %vm1911 = vcmask 64512
      %1912 = vst.msk [vmem:[%s149] sm:$0xff] %vm1911, %v1895
      %1913 = vst.msk [vmem:[%s149 + $0x8] sm:$0xff] %vm1911, %v1896
      %1914 = vst.msk [vmem:[%s149 + $0x10] sm:$0xff] %vm1911, %v1897
      %1915 = vst.msk [vmem:[%s149 + $0x18] sm:$0xff] %vm1911, %v1898
      %1916 = vst.msk [vmem:[%s149 + $0x20] sm:$0xff] %vm1911, %v1899
      %1917 = vst.msk [vmem:[%s149 + $0x28] sm:$0xff] %vm1911, %v1900
      %1918 = vst.msk [vmem:[%s149 + $0x30] sm:$0xff] %vm1911, %v1901
      %1919 = vst.msk [vmem:[%s149 + $0x38] sm:$0xff] %vm1911, %v1902
      %1920 = vst.msk [vmem:[%s149 + $0x40] sm:$0xff] %vm1911, %v1903
      %1921 = vst.msk [vmem:[%s149 + $0x48] sm:$0xff] %vm1911, %v1904
      %1922 = vst.msk [vmem:[%s149 + $0x50] sm:$0xff] %vm1911, %v1905
      %1923 = vst.msk [vmem:[%s149 + $0x58] sm:$0xff] %vm1911, %v1906
      %1924 = vst.msk [vmem:[%s149 + $0x60] sm:$0xff] %vm1911, %v1907
      %1925 = vst.msk [vmem:[%s149 + $0x68] sm:$0xff] %vm1911, %v1908
      %1926 = vst.msk [vmem:[%s149 + $0x70] sm:$0xff] %vm1911, %v1909
      %1927 = vst.msk [vmem:[%s149 + $0x78] sm:$0xff] %vm1911, %v1910
      %s1928 = smul.u32 16, %s16
      %p1929 = scmp.lt.s32.totalorder %s1928, 31
      %s1930 = scalar_select %p1929, %s1928, 31
      %p1931 = scmp.lt.s32.totalorder %s17, 0
      %s1932 = scalar_select %p1931, %s17, 0
      %s1933 = sadd.s32 %s1932, %s1930
      %s1934 = smul.addr %s1933, 8
      %s1935 = scalar_lea.vmem %s1, %s1934
      // Predicated region
      $region25: #{tpu_custom_call.1} parent=23 // pred_check
        %p1936 = pneg %p72
      $region26: #{tpu_custom_call.1} parent=23 // pred_check_branch
        %1938 = sbr.rel (%p1936) target = $region28
      $region27: #{tpu_custom_call.1} parent=23 // pred_region
        %s1939 = smul.u32 16, %s16
      $region28: #{tpu_custom_call.1} parent=23 // pred_fallthru
        _
    $region24: #{tpu_custom_call.1} parent=5 // pred_fallthru
      _
    %p1940 = scmp.le.s32.totalorder 2, %s7
    // Predicated region
    $region29: #{tpu_custom_call.1} parent=5 // pred_check
      %p1941 = pneg %p1940
    $region30: #{tpu_custom_call.1} parent=5 // pred_check_branch
      %1943 = sbr.rel (%p1941) target = $region32
    $region31: #{tpu_custom_call.1} parent=5 // pred_region
      %s1944 = ssub.s32 %s7, 2
      // Predicated region
      $region33: #{tpu_custom_call.1} parent=31 // pred_check
        %p1945 = pneg %p78
      $region34: #{tpu_custom_call.1} parent=31 // pred_check_branch
        %1947 = sbr.rel (%p1945) target = $region36
      $region35: #{tpu_custom_call.1} parent=31 // pred_region
        %s1948 = smul.u32 16, %s18
        %p1949 = scmp.lt.s32.totalorder %s1948, 31
        %s1950 = scalar_select %p1949, %s1948, 31
        %p1951 = scmp.lt.s32.totalorder %s19, 0
        %s1952 = scalar_select %p1951, %s19, 0
        %s1953 = sadd.s32 %s1952, %s1950
        %s1954 = smul.addr %s1953, 8
        %s1955 = scalar_lea.vmem %s1, %s1954
      $region36: #{tpu_custom_call.1} parent=31 // pred_fallthru
        _
    $region32: #{tpu_custom_call.1} parent=5 // pred_fallthru
      _
  $region6: #{tpu_custom_call.1} parent=0 // loop_footer
    %s11 = sadd.s32 1, %s7
  $region7: #{tpu_custom_call.1} parent=0 // loop_footer_branch
    %6 = sbr.rel target = $region3
  $region8: #{tpu_custom_call.1} parent=0 // loop_exit
    _

</llo_original>
